<compile_context>
chip_gen: v7x
topology: tpu7x:2x2x1
jax: 0.10.0
libtpu: 0.0.40
codegen_flags: <defaults>
</compile_context>

<pallas_src>
import functools

import jax
import jax.numpy as jnp
from jax import lax
from jax.experimental import pallas as pl
from jax.experimental.pallas import tpu as pltpu


def _layer_norm(x, gamma, beta, eps=1e-6):
    # BERT-pytorch custom LayerNorm uses eps=1e-6 (vs torch.nn.LayerNorm 1e-5).
    mu = jnp.mean(x, axis=-1, keepdims=True)
    xc = x - mu
    var = jnp.mean(xc * xc, axis=-1, keepdims=True)
    return xc * lax.rsqrt(var + eps) * gamma + beta


def transformer_block_kernel(
    # inputs
    x_ref,        # (1, T, C)  full sequence (for K/V + full-seq LN)
    xq_ref,       # (1, TQ, C) query tile of the same sequence
    kmask_ref,    # (1, 1, T)  key-valid mask, 1.0 = attend
    wq_ref, bq_ref, wk_ref, bk_ref, wv_ref, bv_ref, wo_ref, bo_ref,
    ln1_g_ref, ln1_b_ref, ln2_g_ref, ln2_b_ref,
    w1_ref, b1_ref, w2_ref, b2_ref,
    # output
    o_ref,        # (1, TQ, C)
    *, num_heads,
):
    f32 = jnp.float32
    bf16 = jnp.bfloat16

    x_full = x_ref[0].astype(f32)    # (T, C)
    x_q = xq_ref[0].astype(f32)      # (TQ, C)
    T, C = x_full.shape
    H = num_heads
    dk = C // H
    scale = f32(1.0 / (dk ** 0.5))

    # Key-padding mask: compare once, reuse for every head (hoisted out of any loop).
    key_valid = kmask_ref[0] > 0.0   # (1, T) bool

    # ---------------- input sublayer: x + Attn(LN(x), mask) ----------------
    xn_kv = _layer_norm(x_full, ln1_g_ref[...], ln1_b_ref[...])   # f32 (T, C)
    xn_q = _layer_norm(x_q, ln1_g_ref[...], ln1_b_ref[...])       # f32 (TQ, C)

    # Fused, C-wide projections: bf16 inputs, f32 accumulation on the MXU.
    q = jnp.dot(xn_q.astype(bf16), wq_ref[...],
                preferred_element_type=f32) + bq_ref[...]          # (TQ, C)
    k = jnp.dot(xn_kv.astype(bf16), wk_ref[...],
                preferred_element_type=f32) + bk_ref[...]          # (T, C)
    v = jnp.dot(xn_kv.astype(bf16), wv_ref[...],
                preferred_element_type=f32) + bv_ref[...]          # (T, C)

    # Split heads with static lane slices, batch them on a leading axis so the
    # attention core is two batched einsums (no unrolled per-head loop).
    q3 = jnp.stack([q[:, h * dk:(h + 1) * dk] for h in range(H)],
                   axis=0).astype(bf16)                            # (H, TQ, dk)
    k3 = jnp.stack([k[:, h * dk:(h + 1) * dk] for h in range(H)],
                   axis=0).astype(bf16)                            # (H, T, dk)
    v3 = jnp.stack([v[:, h * dk:(h + 1) * dk] for h in range(H)],
                   axis=0).astype(bf16)                            # (H, T, dk)

    scores = jnp.einsum('hqd,hkd->hqk', q3, k3,
                        preferred_element_type=f32) * scale        # (H, TQ, T)
    scores = jnp.where(key_valid[None], scores, f32(-1e9))

    # Softmax in f32; normalization via approximate reciprocal on the EUP.
    m = jnp.max(scores, axis=-1, keepdims=True)
    e = jnp.exp(scores - m)
    denom = jnp.sum(e, axis=-1, keepdims=True)
    probs = e * pl.reciprocal(denom, approx=True)                  # (H, TQ, T)

    ctx = jnp.einsum('hqk,hkd->hqd', probs.astype(bf16), v3,
                     preferred_element_type=f32)                   # (H, TQ, dk)
    ctx_cat = jnp.concatenate([ctx[h] for h in range(H)], axis=-1)  # (TQ, C)

    # Single fused output projection (T,C)@(C,C) instead of H small matmuls.
    attn = jnp.dot(ctx_cat.astype(bf16), wo_ref[...],
                   preferred_element_type=f32) + bo_ref[...]       # (TQ, C)

    h1 = x_q + attn

    # ---------------- output sublayer: h + FFN(LN(h)) ----------------------
    hn = _layer_norm(h1, ln2_g_ref[...], ln2_b_ref[...])
    ff = jnp.dot(hn.astype(bf16), w1_ref[...],
                 preferred_element_type=f32) + b1_ref[...]
    ff = jax.nn.gelu(ff, approximate=True)   # BERT-pytorch tanh-approx GELU, f32
    ff2 = jnp.dot(ff.astype(bf16), w2_ref[...],
                  preferred_element_type=f32) + b2_ref[...]

    o_ref[0] = (h1 + ff2).astype(o_ref.dtype)


def transformer_block(x, key_mask, params, *, num_heads, q_tile=None):
    """x: (B, T, C) f32. key_mask: (B, T) f32, 1.0 = key position is valid."""
    B, T, C = x.shape
    assert C % num_heads == 0
    if q_tile is None:
        q_tile = T if T <= 512 else 512     # per-generation sweep for real sizes
    assert T % q_tile == 0
    nq = T // q_tile

    (wq, bq, wk, bk, wv, bv, wo, bo,
     ln1_g, ln1_b, ln2_g, ln2_b, w1, b1, w2, b2) = params

    # bf16 copies of the matmul weights (halves HBM traffic + resident VMEM);
    # biases and LayerNorm params stay f32.
    bf = jnp.bfloat16
    mat_params = (wq.astype(bf), bq, wk.astype(bf), bk, wv.astype(bf), bv,
                  wo.astype(bf), bo, ln1_g, ln1_b, ln2_g, ln2_b,
                  w1.astype(bf), b1, w2.astype(bf), b2)

    km = key_mask.reshape(B, 1, T).astype(jnp.float32)

    kernel = functools.partial(transformer_block_kernel, num_heads=num_heads)

    def const_spec(shape):
        zeros = (0,) * len(shape)
        return pl.BlockSpec(shape, lambda b, j, _z=zeros: _z)

    in_specs = [
        pl.BlockSpec((1, T, C), lambda b, j: (b, 0, 0)),        # x, full sequence
        pl.BlockSpec((1, q_tile, C), lambda b, j: (b, j, 0)),   # x, query tile
        pl.BlockSpec((1, 1, T), lambda b, j: (b, 0, 0)),        # key-valid mask
    ] + [const_spec(p.shape) for p in mat_params]

    return pl.pallas_call(
        kernel,
        out_shape=jax.ShapeDtypeStruct((B, T, C), jnp.float32),
        grid=(B, nq),
        in_specs=in_specs,
        out_specs=pl.BlockSpec((1, q_tile, C), lambda b, j: (b, j, 0)),
        compiler_params=pltpu.CompilerParams(
            dimension_semantics=("parallel", "parallel")),
    )(x, x, km, *mat_params)


def init_params(key, hidden, num_heads, ff_hidden):
    del num_heads  # weights are stored fused (C, C), not per head
    ks = jax.random.split(key, 12)
    s = 0.02
    f32 = jnp.float32
    wq = s * jax.random.normal(ks[0], (hidden, hidden), f32)
    bq = s * jax.random.normal(ks[1], (1, hidden), f32)
    wk = s * jax.random.normal(ks[2], (hidden, hidden), f32)
    bk = s * jax.random.normal(ks[3], (1, hidden), f32)
    wv = s * jax.random.normal(ks[4], (hidden, hidden), f32)
    bv = s * jax.random.normal(ks[5], (1, hidden), f32)
    wo = s * jax.random.normal(ks[6], (hidden, hidden), f32)
    bo = s * jax.random.normal(ks[7], (1, hidden), f32)
    ln1_g = jnp.ones((1, hidden), f32)
    ln1_b = jnp.zeros((1, hidden), f32)
    ln2_g = jnp.ones((1, hidden), f32)
    ln2_b = jnp.zeros((1, hidden), f32)
    w1 = s * jax.random.normal(ks[8], (hidden, ff_hidden), f32)
    b1 = s * jax.random.normal(ks[9], (1, ff_hidden), f32)
    w2 = s * jax.random.normal(ks[10], (ff_hidden, hidden), f32)
    b2 = s * jax.random.normal(ks[11], (1, hidden), f32)
    return (wq, bq, wk, bk, wv, bv, wo, bo,
            ln1_g, ln1_b, ln2_g, ln2_b, w1, b1, w2, b2)


if __name__ == "__main__":
    B, T, HIDDEN = 2, 8, 32
    ATTN_HEADS = 4
    FF_HIDDEN = 4 * HIDDEN  # 128

    root = jax.random.PRNGKey(0)
    kx, kp = jax.random.split(root)

    x = jax.random.normal(kx, (B, T, HIDDEN), jnp.float32)

    # Padding mask as a (B, T) key-valid vector: batch 0 fully valid,
    # batch 1 has its last 2 key positions masked out.
    key_mask = jnp.array([[1.0] * T, [1.0] * (T - 2) + [0.0] * 2], jnp.float32)

    params = init_params(kp, HIDDEN, ATTN_HEADS, FF_HIDDEN)

    out = transformer_block(x, key_mask, params, num_heads=ATTN_HEADS)
    out = jax.block_until_ready(out)

    assert out.shape == (B, T, HIDDEN), out.shape
    assert bool(jnp.all(jnp.isfinite(out)))
    print("KERNEL_OK")
</pallas_src>

<mosaic_0001>
module attributes {stable_mosaic.version = 11 : i64} {
  func.func @transformer_block_kernel(%arg0: i32, %arg1: i32, %arg2: memref<1x8x32xf32, #tpu.memory_space<vmem>>, %arg3: memref<1x8x32xf32, #tpu.memory_space<vmem>>, %arg4: memref<1x1x8xf32, #tpu.memory_space<vmem>>, %arg5: memref<32x32xbf16, #tpu.memory_space<vmem>>, %arg6: memref<1x32xf32, #tpu.memory_space<vmem>>, %arg7: memref<32x32xbf16, #tpu.memory_space<vmem>>, %arg8: memref<1x32xf32, #tpu.memory_space<vmem>>, %arg9: memref<32x32xbf16, #tpu.memory_space<vmem>>, %arg10: memref<1x32xf32, #tpu.memory_space<vmem>>, %arg11: memref<32x32xbf16, #tpu.memory_space<vmem>>, %arg12: memref<1x32xf32, #tpu.memory_space<vmem>>, %arg13: memref<1x32xf32, #tpu.memory_space<vmem>>, %arg14: memref<1x32xf32, #tpu.memory_space<vmem>>, %arg15: memref<1x32xf32, #tpu.memory_space<vmem>>, %arg16: memref<1x32xf32, #tpu.memory_space<vmem>>, %arg17: memref<32x128xbf16, #tpu.memory_space<vmem>>, %arg18: memref<1x128xf32, #tpu.memory_space<vmem>>, %arg19: memref<128x32xbf16, #tpu.memory_space<vmem>>, %arg20: memref<1x32xf32, #tpu.memory_space<vmem>>, %arg21: memref<1x8x32xf32, #tpu.memory_space<vmem>>) attributes {dimension_semantics = [#tpu.dimension_semantics<parallel>, #tpu.dimension_semantics<parallel>], iteration_bounds = array<i64: 2, 1>, scalar_prefetch = 0 : i64, scratch_operands = 0 : i64, tpu.core_type = #tpu.core_type<tc>, window_params = [{transform_indices = @transform_0, window_bounds = array<i64: 1, 8, 32>}, {transform_indices = @transform_1, window_bounds = array<i64: 1, 8, 32>}, {transform_indices = @transform_2, window_bounds = array<i64: 1, 1, 8>}, {pipeline_mode = #tpu.pipeline_mode<synchronous>, transform_indices = @transform_3, window_bounds = array<i64: 32, 32>}, {pipeline_mode = #tpu.pipeline_mode<synchronous>, transform_indices = @transform_4, window_bounds = array<i64: 1, 32>}, {pipeline_mode = #tpu.pipeline_mode<synchronous>, transform_indices = @transform_5, window_bounds = array<i64: 32, 32>}, {pipeline_mode = #tpu.pipeline_mode<synchronous>, transform_indices = @transform_6, window_bounds = array<i64: 1, 32>}, {pipeline_mode = #tpu.pipeline_mode<synchronous>, transform_indices = @transform_7, window_bounds = array<i64: 32, 32>}, {pipeline_mode = #tpu.pipeline_mode<synchronous>, transform_indices = @transform_8, window_bounds = array<i64: 1, 32>}, {pipeline_mode = #tpu.pipeline_mode<synchronous>, transform_indices = @transform_9, window_bounds = array<i64: 32, 32>}, {pipeline_mode = #tpu.pipeline_mode<synchronous>, transform_indices = @transform_10, window_bounds = array<i64: 1, 32>}, {pipeline_mode = #tpu.pipeline_mode<synchronous>, transform_indices = @transform_11, window_bounds = array<i64: 1, 32>}, {pipeline_mode = #tpu.pipeline_mode<synchronous>, transform_indices = @transform_12, window_bounds = array<i64: 1, 32>}, {pipeline_mode = #tpu.pipeline_mode<synchronous>, transform_indices = @transform_13, window_bounds = array<i64: 1, 32>}, {pipeline_mode = #tpu.pipeline_mode<synchronous>, transform_indices = @transform_14, window_bounds = array<i64: 1, 32>}, {pipeline_mode = #tpu.pipeline_mode<synchronous>, transform_indices = @transform_15, window_bounds = array<i64: 32, 128>}, {pipeline_mode = #tpu.pipeline_mode<synchronous>, transform_indices = @transform_16, window_bounds = array<i64: 1, 128>}, {pipeline_mode = #tpu.pipeline_mode<synchronous>, transform_indices = @transform_17, window_bounds = array<i64: 128, 32>}, {pipeline_mode = #tpu.pipeline_mode<synchronous>, transform_indices = @transform_18, window_bounds = array<i64: 1, 32>}, {transform_indices = @transform_19, window_bounds = array<i64: 1, 8, 32>}]} {
    %c0 = arith.constant 0 : index
    %c0_0 = arith.constant 0 : index
    %c0_1 = arith.constant 0 : index
    %0 = vector.load %arg2[%c0, %c0_0, %c0_1] : memref<1x8x32xf32, #tpu.memory_space<vmem>>, vector<1x8x32xf32>
    %1 = vector.shape_cast %0 : vector<1x8x32xf32> to vector<8x32xf32>
    %c0_2 = arith.constant 0 : index
    %c0_3 = arith.constant 0 : index
    %c0_4 = arith.constant 0 : index
    %2 = vector.load %arg3[%c0_2, %c0_3, %c0_4] : memref<1x8x32xf32, #tpu.memory_space<vmem>>, vector<1x8x32xf32>
    %3 = vector.shape_cast %2 : vector<1x8x32xf32> to vector<8x32xf32>
    %c0_5 = arith.constant 0 : index
    %c0_6 = arith.constant 0 : index
    %c0_7 = arith.constant 0 : index
    %4 = vector.load %arg4[%c0_5, %c0_6, %c0_7] : memref<1x1x8xf32, #tpu.memory_space<vmem>>, vector<1x1x8xf32>
    %5 = vector.shape_cast %4 : vector<1x1x8xf32> to vector<1x8xf32>
    %cst = arith.constant 0.000000e+00 : f32
    %6 = vector.broadcast %cst : f32 to vector<1x8xf32>
    %7 = arith.cmpf ogt, %5, %6 : vector<1x8xf32>
    %c0_8 = arith.constant 0 : index
    %c0_9 = arith.constant 0 : index
    %8 = vector.load %arg13[%c0_8, %c0_9] : memref<1x32xf32, #tpu.memory_space<vmem>>, vector<1x32xf32>
    %c0_10 = arith.constant 0 : index
    %c0_11 = arith.constant 0 : index
    %9 = vector.load %arg14[%c0_10, %c0_11] : memref<1x32xf32, #tpu.memory_space<vmem>>, vector<1x32xf32>
    %cst_12 = arith.constant dense<0.000000e+00> : vector<8xf32>
    %10 = vector.multi_reduction <add>, %1, %cst_12 [1] : vector<8x32xf32> to vector<8xf32>
    %11 = vector.shape_cast %10 : vector<8xf32> to vector<8x1xf32>
    %cst_13 = arith.constant 3.200000e+01 : f32
    %12 = vector.broadcast %cst_13 : f32 to vector<8x1xf32>
    %13 = arith.divf %11, %12 : vector<8x1xf32>
    %14 = vector.broadcast %13 : vector<8x1xf32> to vector<8x32xf32>
    %15 = arith.subf %1, %14 : vector<8x32xf32>
    %16 = arith.mulf %15, %15 : vector<8x32xf32>
    %cst_14 = arith.constant dense<0.000000e+00> : vector<8xf32>
    %17 = vector.multi_reduction <add>, %16, %cst_14 [1] : vector<8x32xf32> to vector<8xf32>
    %18 = vector.shape_cast %17 : vector<8xf32> to vector<8x1xf32>
    %cst_15 = arith.constant 3.200000e+01 : f32
    %19 = vector.broadcast %cst_15 : f32 to vector<8x1xf32>
    %20 = arith.divf %18, %19 : vector<8x1xf32>
    %cst_16 = arith.constant 9.99999997E-7 : f32
    %21 = vector.broadcast %cst_16 : f32 to vector<8x1xf32>
    %22 = arith.addf %20, %21 : vector<8x1xf32>
    %23 = math.rsqrt %22 : vector<8x1xf32>
    %24 = vector.broadcast %23 : vector<8x1xf32> to vector<8x32xf32>
    %25 = arith.mulf %15, %24 : vector<8x32xf32>
    %26 = vector.broadcast %8 : vector<1x32xf32> to vector<8x32xf32>
    %27 = arith.mulf %25, %26 : vector<8x32xf32>
    %28 = vector.broadcast %9 : vector<1x32xf32> to vector<8x32xf32>
    %29 = arith.addf %27, %28 : vector<8x32xf32>
    %c0_17 = arith.constant 0 : index
    %c0_18 = arith.constant 0 : index
    %30 = vector.load %arg13[%c0_17, %c0_18] : memref<1x32xf32, #tpu.memory_space<vmem>>, vector<1x32xf32>
    %c0_19 = arith.constant 0 : index
    %c0_20 = arith.constant 0 : index
    %31 = vector.load %arg14[%c0_19, %c0_20] : memref<1x32xf32, #tpu.memory_space<vmem>>, vector<1x32xf32>
    %cst_21 = arith.constant dense<0.000000e+00> : vector<8xf32>
    %32 = vector.multi_reduction <add>, %3, %cst_21 [1] : vector<8x32xf32> to vector<8xf32>
    %33 = vector.shape_cast %32 : vector<8xf32> to vector<8x1xf32>
    %cst_22 = arith.constant 3.200000e+01 : f32
    %34 = vector.broadcast %cst_22 : f32 to vector<8x1xf32>
    %35 = arith.divf %33, %34 : vector<8x1xf32>
    %36 = vector.broadcast %35 : vector<8x1xf32> to vector<8x32xf32>
    %37 = arith.subf %3, %36 : vector<8x32xf32>
    %38 = arith.mulf %37, %37 : vector<8x32xf32>
    %cst_23 = arith.constant dense<0.000000e+00> : vector<8xf32>
    %39 = vector.multi_reduction <add>, %38, %cst_23 [1] : vector<8x32xf32> to vector<8xf32>
    %40 = vector.shape_cast %39 : vector<8xf32> to vector<8x1xf32>
    %cst_24 = arith.constant 3.200000e+01 : f32
    %41 = vector.broadcast %cst_24 : f32 to vector<8x1xf32>
    %42 = arith.divf %40, %41 : vector<8x1xf32>
    %cst_25 = arith.constant 9.99999997E-7 : f32
    %43 = vector.broadcast %cst_25 : f32 to vector<8x1xf32>
    %44 = arith.addf %42, %43 : vector<8x1xf32>
    %45 = math.rsqrt %44 : vector<8x1xf32>
    %46 = vector.broadcast %45 : vector<8x1xf32> to vector<8x32xf32>
    %47 = arith.mulf %37, %46 : vector<8x32xf32>
    %48 = vector.broadcast %30 : vector<1x32xf32> to vector<8x32xf32>
    %49 = arith.mulf %47, %48 : vector<8x32xf32>
    %50 = vector.broadcast %31 : vector<1x32xf32> to vector<8x32xf32>
    %51 = arith.addf %49, %50 : vector<8x32xf32>
    %52 = arith.truncf %51 : vector<8x32xf32> to vector<8x32xbf16>
    %c0_26 = arith.constant 0 : index
    %c0_27 = arith.constant 0 : index
    %53 = vector.load %arg5[%c0_26, %c0_27] : memref<32x32xbf16, #tpu.memory_space<vmem>>, vector<32x32xbf16>
    %cst_28 = arith.constant dense<0.000000e+00> : vector<8x32xf32>
    %54 = tpu.matmul %52, %53, %cst_28 {dimension_numbers = #tpu.dot_dimension_numbers<[1], [0], [0], [1], [0, 0, 1, 1], [], []>} : vector<8x32xbf16>, vector<32x32xbf16>, vector<8x32xf32> -> vector<8x32xf32>
    %c0_29 = arith.constant 0 : index
    %c0_30 = arith.constant 0 : index
    %55 = vector.load %arg6[%c0_29, %c0_30] : memref<1x32xf32, #tpu.memory_space<vmem>>, vector<1x32xf32>
    %56 = vector.broadcast %55 : vector<1x32xf32> to vector<8x32xf32>
    %57 = arith.addf %54, %56 : vector<8x32xf32>
    %58 = arith.truncf %29 : vector<8x32xf32> to vector<8x32xbf16>
    %c0_31 = arith.constant 0 : index
    %c0_32 = arith.constant 0 : index
    %59 = vector.load %arg7[%c0_31, %c0_32] : memref<32x32xbf16, #tpu.memory_space<vmem>>, vector<32x32xbf16>
    %cst_33 = arith.constant dense<0.000000e+00> : vector<8x32xf32>
    %60 = tpu.matmul %58, %59, %cst_33 {dimension_numbers = #tpu.dot_dimension_numbers<[1], [0], [0], [1], [0, 0, 1, 1], [], []>} : vector<8x32xbf16>, vector<32x32xbf16>, vector<8x32xf32> -> vector<8x32xf32>
    %c0_34 = arith.constant 0 : index
    %c0_35 = arith.constant 0 : index
    %61 = vector.load %arg8[%c0_34, %c0_35] : memref<1x32xf32, #tpu.memory_space<vmem>>, vector<1x32xf32>
    %62 = vector.broadcast %61 : vector<1x32xf32> to vector<8x32xf32>
    %63 = arith.addf %60, %62 : vector<8x32xf32>
    %64 = arith.truncf %29 : vector<8x32xf32> to vector<8x32xbf16>
    %c0_36 = arith.constant 0 : index
    %c0_37 = arith.constant 0 : index
    %65 = vector.load %arg9[%c0_36, %c0_37] : memref<32x32xbf16, #tpu.memory_space<vmem>>, vector<32x32xbf16>
    %cst_38 = arith.constant dense<0.000000e+00> : vector<8x32xf32>
    %66 = tpu.matmul %64, %65, %cst_38 {dimension_numbers = #tpu.dot_dimension_numbers<[1], [0], [0], [1], [0, 0, 1, 1], [], []>} : vector<8x32xbf16>, vector<32x32xbf16>, vector<8x32xf32> -> vector<8x32xf32>
    %c0_39 = arith.constant 0 : index
    %c0_40 = arith.constant 0 : index
    %67 = vector.load %arg10[%c0_39, %c0_40] : memref<1x32xf32, #tpu.memory_space<vmem>>, vector<1x32xf32>
    %68 = vector.broadcast %67 : vector<1x32xf32> to vector<8x32xf32>
    %69 = arith.addf %66, %68 : vector<8x32xf32>
    %70 = vector.extract_strided_slice %57 {offsets = [0, 0], sizes = [8, 8], strides = [1, 1]} : vector<8x32xf32> to vector<8x8xf32>
    %71 = vector.extract_strided_slice %57 {offsets = [0, 8], sizes = [8, 8], strides = [1, 1]} : vector<8x32xf32> to vector<8x8xf32>
    %72 = vector.extract_strided_slice %57 {offsets = [0, 16], sizes = [8, 8], strides = [1, 1]} : vector<8x32xf32> to vector<8x8xf32>
    %73 = vector.extract_strided_slice %57 {offsets = [0, 24], sizes = [8, 8], strides = [1, 1]} : vector<8x32xf32> to vector<8x8xf32>
    %74 = vector.shape_cast %70 : vector<8x8xf32> to vector<1x8x8xf32>
    %75 = vector.shape_cast %71 : vector<8x8xf32> to vector<1x8x8xf32>
    %76 = vector.shape_cast %72 : vector<8x8xf32> to vector<1x8x8xf32>
    %77 = vector.shape_cast %73 : vector<8x8xf32> to vector<1x8x8xf32>
    %78 = tpu.concatenate %74, %75, %76, %77 in 0 : vector<1x8x8xf32>, vector<1x8x8xf32>, vector<1x8x8xf32>, vector<1x8x8xf32> -> vector<4x8x8xf32>
    %79 = arith.truncf %78 : vector<4x8x8xf32> to vector<4x8x8xbf16>
    %80 = vector.extract_strided_slice %63 {offsets = [0, 0], sizes = [8, 8], strides = [1, 1]} : vector<8x32xf32> to vector<8x8xf32>
    %81 = vector.extract_strided_slice %63 {offsets = [0, 8], sizes = [8, 8], strides = [1, 1]} : vector<8x32xf32> to vector<8x8xf32>
    %82 = vector.extract_strided_slice %63 {offsets = [0, 16], sizes = [8, 8], strides = [1, 1]} : vector<8x32xf32> to vector<8x8xf32>
    %83 = vector.extract_strided_slice %63 {offsets = [0, 24], sizes = [8, 8], strides = [1, 1]} : vector<8x32xf32> to vector<8x8xf32>
    %84 = vector.shape_cast %80 : vector<8x8xf32> to vector<1x8x8xf32>
    %85 = vector.shape_cast %81 : vector<8x8xf32> to vector<1x8x8xf32>
    %86 = vector.shape_cast %82 : vector<8x8xf32> to vector<1x8x8xf32>
    %87 = vector.shape_cast %83 : vector<8x8xf32> to vector<1x8x8xf32>
    %88 = tpu.concatenate %84, %85, %86, %87 in 0 : vector<1x8x8xf32>, vector<1x8x8xf32>, vector<1x8x8xf32>, vector<1x8x8xf32> -> vector<4x8x8xf32>
    %89 = arith.truncf %88 : vector<4x8x8xf32> to vector<4x8x8xbf16>
    %90 = vector.extract_strided_slice %69 {offsets = [0, 0], sizes = [8, 8], strides = [1, 1]} : vector<8x32xf32> to vector<8x8xf32>
    %91 = vector.extract_strided_slice %69 {offsets = [0, 8], sizes = [8, 8], strides = [1, 1]} : vector<8x32xf32> to vector<8x8xf32>
    %92 = vector.extract_strided_slice %69 {offsets = [0, 16], sizes = [8, 8], strides = [1, 1]} : vector<8x32xf32> to vector<8x8xf32>
    %93 = vector.extract_strided_slice %69 {offsets = [0, 24], sizes = [8, 8], strides = [1, 1]} : vector<8x32xf32> to vector<8x8xf32>
    %94 = vector.shape_cast %90 : vector<8x8xf32> to vector<1x8x8xf32>
    %95 = vector.shape_cast %91 : vector<8x8xf32> to vector<1x8x8xf32>
    %96 = vector.shape_cast %92 : vector<8x8xf32> to vector<1x8x8xf32>
    %97 = vector.shape_cast %93 : vector<8x8xf32> to vector<1x8x8xf32>
    %98 = tpu.concatenate %94, %95, %96, %97 in 0 : vector<1x8x8xf32>, vector<1x8x8xf32>, vector<1x8x8xf32>, vector<1x8x8xf32> -> vector<4x8x8xf32>
    %99 = arith.truncf %98 : vector<4x8x8xf32> to vector<4x8x8xbf16>
    "tpu.trace_start"() <{level = 10 : i32, message = "hqd,hkd->hqk"}> : () -> ()
    %cst_41 = arith.constant dense<0.000000e+00> : vector<4x8x8xf32>
    %100 = tpu.matmul %79, %89, %cst_41 {dimension_numbers = #tpu.dot_dimension_numbers<[2], [2], [1], [1], [0, 0, 0, 1, 1, 1], [0], [0]>} : vector<4x8x8xbf16>, vector<4x8x8xbf16>, vector<4x8x8xf32> -> vector<4x8x8xf32>
    "tpu.trace_stop"() : () -> ()
    %cst_42 = arith.constant 0.353553385 : f32
    %101 = vector.broadcast %cst_42 : f32 to vector<4x8x8xf32>
    %102 = arith.mulf %100, %101 : vector<4x8x8xf32>
    %103 = vector.shape_cast %7 : vector<1x8xi1> to vector<1x1x8xi1>
    %cst_43 = arith.constant -1.000000e+09 : f32
    %104 = vector.shape_cast %103 : vector<1x1x8xi1> to vector<1x1x8xi1>
    %105 = vector.broadcast %104 : vector<1x1x8xi1> to vector<4x8x8xi1>
    %106 = vector.broadcast %cst_43 : f32 to vector<4x8x8xf32>
    %107 = arith.select %105, %102, %106 : vector<4x8x8xi1>, vector<4x8x8xf32>
    %cst_44 = arith.constant dense<0xFF800000> : vector<4x8xf32>
    %108 = vector.multi_reduction <maximumf>, %107, %cst_44 [2] : vector<4x8x8xf32> to vector<4x8xf32>
    %109 = vector.shape_cast %108 : vector<4x8xf32> to vector<4x8x1xf32>
    %110 = vector.broadcast %109 : vector<4x8x1xf32> to vector<4x8x8xf32>
    %111 = arith.subf %107, %110 : vector<4x8x8xf32>
    %112 = math.exp %111 : vector<4x8x8xf32>
    %cst_45 = arith.constant dense<0.000000e+00> : vector<4x8xf32>
    %113 = vector.multi_reduction <add>, %112, %cst_45 [2] : vector<4x8x8xf32> to vector<4x8xf32>
    %114 = vector.shape_cast %113 : vector<4x8xf32> to vector<4x8x1xf32>
    %115 = tpu.reciprocal %114 {approx = true} : vector<4x8x1xf32> -> vector<4x8x1xf32>
    %116 = vector.broadcast %115 : vector<4x8x1xf32> to vector<4x8x8xf32>
    %117 = arith.mulf %112, %116 : vector<4x8x8xf32>
    %118 = arith.truncf %117 : vector<4x8x8xf32> to vector<4x8x8xbf16>
    "tpu.trace_start"() <{level = 10 : i32, message = "hqk,hkd->hqd"}> : () -> ()
    %cst_46 = arith.constant dense<0.000000e+00> : vector<4x8x8xf32>
    %119 = tpu.matmul %118, %99, %cst_46 {dimension_numbers = #tpu.dot_dimension_numbers<[2], [1], [1], [2], [0, 0, 0, 1, 1, 2], [0], [0]>} : vector<4x8x8xbf16>, vector<4x8x8xbf16>, vector<4x8x8xf32> -> vector<4x8x8xf32>
    "tpu.trace_stop"() : () -> ()
    %120 = vector.extract_strided_slice %119 {offsets = [0, 0, 0], sizes = [1, 8, 8], strides = [1, 1, 1]} : vector<4x8x8xf32> to vector<1x8x8xf32>
    %121 = vector.shape_cast %120 : vector<1x8x8xf32> to vector<8x8xf32>
    %122 = vector.extract_strided_slice %119 {offsets = [1, 0, 0], sizes = [1, 8, 8], strides = [1, 1, 1]} : vector<4x8x8xf32> to vector<1x8x8xf32>
    %123 = vector.shape_cast %122 : vector<1x8x8xf32> to vector<8x8xf32>
    %124 = vector.extract_strided_slice %119 {offsets = [2, 0, 0], sizes = [1, 8, 8], strides = [1, 1, 1]} : vector<4x8x8xf32> to vector<1x8x8xf32>
    %125 = vector.shape_cast %124 : vector<1x8x8xf32> to vector<8x8xf32>
    %126 = vector.extract_strided_slice %119 {offsets = [3, 0, 0], sizes = [1, 8, 8], strides = [1, 1, 1]} : vector<4x8x8xf32> to vector<1x8x8xf32>
    %127 = vector.shape_cast %126 : vector<1x8x8xf32> to vector<8x8xf32>
    %128 = tpu.concatenate %121, %123, %125, %127 in 1 : vector<8x8xf32>, vector<8x8xf32>, vector<8x8xf32>, vector<8x8xf32> -> vector<8x32xf32>
    %129 = arith.truncf %128 : vector<8x32xf32> to vector<8x32xbf16>
    %c0_47 = arith.constant 0 : index
    %c0_48 = arith.constant 0 : index
    %130 = vector.load %arg11[%c0_47, %c0_48] : memref<32x32xbf16, #tpu.memory_space<vmem>>, vector<32x32xbf16>
    %cst_49 = arith.constant dense<0.000000e+00> : vector<8x32xf32>
    %131 = tpu.matmul %129, %130, %cst_49 {dimension_numbers = #tpu.dot_dimension_numbers<[1], [0], [0], [1], [0, 0, 1, 1], [], []>} : vector<8x32xbf16>, vector<32x32xbf16>, vector<8x32xf32> -> vector<8x32xf32>
    %c0_50 = arith.constant 0 : index
    %c0_51 = arith.constant 0 : index
    %132 = vector.load %arg12[%c0_50, %c0_51] : memref<1x32xf32, #tpu.memory_space<vmem>>, vector<1x32xf32>
    %133 = vector.broadcast %132 : vector<1x32xf32> to vector<8x32xf32>
    %134 = arith.addf %131, %133 : vector<8x32xf32>
    %135 = arith.addf %3, %134 : vector<8x32xf32>
    %c0_52 = arith.constant 0 : index
    %c0_53 = arith.constant 0 : index
    %136 = vector.load %arg15[%c0_52, %c0_53] : memref<1x32xf32, #tpu.memory_space<vmem>>, vector<1x32xf32>
    %c0_54 = arith.constant 0 : index
    %c0_55 = arith.constant 0 : index
    %137 = vector.load %arg16[%c0_54, %c0_55] : memref<1x32xf32, #tpu.memory_space<vmem>>, vector<1x32xf32>
    %cst_56 = arith.constant dense<0.000000e+00> : vector<8xf32>
    %138 = vector.multi_reduction <add>, %135, %cst_56 [1] : vector<8x32xf32> to vector<8xf32>
    %139 = vector.shape_cast %138 : vector<8xf32> to vector<8x1xf32>
    %cst_57 = arith.constant 3.200000e+01 : f32
    %140 = vector.broadcast %cst_57 : f32 to vector<8x1xf32>
    %141 = arith.divf %139, %140 : vector<8x1xf32>
    %142 = vector.broadcast %141 : vector<8x1xf32> to vector<8x32xf32>
    %143 = arith.subf %135, %142 : vector<8x32xf32>
    %144 = arith.mulf %143, %143 : vector<8x32xf32>
    %cst_58 = arith.constant dense<0.000000e+00> : vector<8xf32>
    %145 = vector.multi_reduction <add>, %144, %cst_58 [1] : vector<8x32xf32> to vector<8xf32>
    %146 = vector.shape_cast %145 : vector<8xf32> to vector<8x1xf32>
    %cst_59 = arith.constant 3.200000e+01 : f32
    %147 = vector.broadcast %cst_59 : f32 to vector<8x1xf32>
    %148 = arith.divf %146, %147 : vector<8x1xf32>
    %cst_60 = arith.constant 9.99999997E-7 : f32
    %149 = vector.broadcast %cst_60 : f32 to vector<8x1xf32>
    %150 = arith.addf %148, %149 : vector<8x1xf32>
    %151 = math.rsqrt %150 : vector<8x1xf32>
    %152 = vector.broadcast %151 : vector<8x1xf32> to vector<8x32xf32>
    %153 = arith.mulf %143, %152 : vector<8x32xf32>
    %154 = vector.broadcast %136 : vector<1x32xf32> to vector<8x32xf32>
    %155 = arith.mulf %153, %154 : vector<8x32xf32>
    %156 = vector.broadcast %137 : vector<1x32xf32> to vector<8x32xf32>
    %157 = arith.addf %155, %156 : vector<8x32xf32>
    %158 = arith.truncf %157 : vector<8x32xf32> to vector<8x32xbf16>
    %c0_61 = arith.constant 0 : index
    %c0_62 = arith.constant 0 : index
    %159 = vector.load %arg17[%c0_61, %c0_62] : memref<32x128xbf16, #tpu.memory_space<vmem>>, vector<32x128xbf16>
    %cst_63 = arith.constant dense<0.000000e+00> : vector<8x128xf32>
    %160 = tpu.matmul %158, %159, %cst_63 {dimension_numbers = #tpu.dot_dimension_numbers<[1], [0], [0], [1], [0, 0, 1, 1], [], []>} : vector<8x32xbf16>, vector<32x128xbf16>, vector<8x128xf32> -> vector<8x128xf32>
    %c0_64 = arith.constant 0 : index
    %c0_65 = arith.constant 0 : index
    %161 = vector.load %arg18[%c0_64, %c0_65] : memref<1x128xf32, #tpu.memory_space<vmem>>, vector<1x128xf32>
    %162 = vector.broadcast %161 : vector<1x128xf32> to vector<8x128xf32>
    %163 = arith.addf %160, %162 : vector<8x128xf32>
    %164 = arith.mulf %163, %163 : vector<8x128xf32>
    %165 = arith.mulf %163, %164 : vector<8x128xf32>
    %cst_66 = arith.constant 4.471500e-02 : f32
    %166 = vector.broadcast %cst_66 : f32 to vector<8x128xf32>
    %167 = arith.mulf %166, %165 : vector<8x128xf32>
    %168 = arith.addf %163, %167 : vector<8x128xf32>
    %cst_67 = arith.constant 0.797884583 : f32
    %169 = vector.broadcast %cst_67 : f32 to vector<8x128xf32>
    %170 = arith.mulf %169, %168 : vector<8x128xf32>
    %171 = math.tanh %170 : vector<8x128xf32>
    %cst_68 = arith.constant 1.000000e+00 : f32
    %172 = vector.broadcast %cst_68 : f32 to vector<8x128xf32>
    %173 = arith.addf %172, %171 : vector<8x128xf32>
    %cst_69 = arith.constant 5.000000e-01 : f32
    %174 = vector.broadcast %cst_69 : f32 to vector<8x128xf32>
    %175 = arith.mulf %174, %173 : vector<8x128xf32>
    %176 = arith.mulf %163, %175 : vector<8x128xf32>
    %177 = arith.truncf %176 : vector<8x128xf32> to vector<8x128xbf16>
    %c0_70 = arith.constant 0 : index
    %c0_71 = arith.constant 0 : index
    %178 = vector.load %arg19[%c0_70, %c0_71] : memref<128x32xbf16, #tpu.memory_space<vmem>>, vector<128x32xbf16>
    %cst_72 = arith.constant dense<0.000000e+00> : vector<8x32xf32>
    %179 = tpu.matmul %177, %178, %cst_72 {dimension_numbers = #tpu.dot_dimension_numbers<[1], [0], [0], [1], [0, 0, 1, 1], [], []>} : vector<8x128xbf16>, vector<128x32xbf16>, vector<8x32xf32> -> vector<8x32xf32>
    %c0_73 = arith.constant 0 : index
    %c0_74 = arith.constant 0 : index
    %180 = vector.load %arg20[%c0_73, %c0_74] : memref<1x32xf32, #tpu.memory_space<vmem>>, vector<1x32xf32>
    %181 = vector.broadcast %180 : vector<1x32xf32> to vector<8x32xf32>
    %182 = arith.addf %179, %181 : vector<8x32xf32>
    %183 = arith.addf %135, %182 : vector<8x32xf32>
    %c0_75 = arith.constant 0 : index
    %c0_76 = arith.constant 0 : index
    %c0_77 = arith.constant 0 : index
    %184 = vector.load %arg21[%c0_75, %c0_76, %c0_77] : memref<1x8x32xf32, #tpu.memory_space<vmem>>, vector<1x8x32xf32>
    %185 = vector.shape_cast %184 : vector<1x8x32xf32> to vector<8x32xf32>
    %186 = vector.shape_cast %183 : vector<8x32xf32> to vector<1x8x32xf32>
    tpu.vector_store %arg21[%c0_75, %c0_76, %c0_77], %186 {strides = array<i32>} : memref<1x8x32xf32, #tpu.memory_space<vmem>>, vector<1x8x32xf32>,
    return
  }
  func.func @transform_0(%arg0: i32, %arg1: i32) -> (i32, i32, i32) {
    %c0_i32 = arith.constant 0 : i32
    %c0_i32_0 = arith.constant 0 : i32
    %c0_i32_1 = arith.constant 0 : i32
    return %arg0, %c0_i32, %c0_i32_0 : i32, i32, i32
  }
  func.func @transform_1(%arg0: i32, %arg1: i32) -> (i32, i32, i32) {
    %c0_i32 = arith.constant 0 : i32
    %c0_i32_0 = arith.constant 0 : i32
    return %arg0, %arg1, %c0_i32 : i32, i32, i32
  }
  func.func @transform_2(%arg0: i32, %arg1: i32) -> (i32, i32, i32) {
    %c0_i32 = arith.constant 0 : i32
    %c0_i32_0 = arith.constant 0 : i32
    %c0_i32_1 = arith.constant 0 : i32
    return %arg0, %c0_i32, %c0_i32_0 : i32, i32, i32
  }
  func.func @transform_3(%arg0: i32, %arg1: i32) -> (i32, i32) {
    %c0_i32 = arith.constant 0 : i32
    %c0_i32_0 = arith.constant 0 : i32
    %c0_i32_1 = arith.constant 0 : i32
    return %c0_i32, %c0_i32_0 : i32, i32
  }
  func.func @transform_4(%arg0: i32, %arg1: i32) -> (i32, i32) {
    %c0_i32 = arith.constant 0 : i32
    %c0_i32_0 = arith.constant 0 : i32
    %c0_i32_1 = arith.constant 0 : i32
    return %c0_i32, %c0_i32_0 : i32, i32
  }
  func.func @transform_5(%arg0: i32, %arg1: i32) -> (i32, i32) {
    %c0_i32 = arith.constant 0 : i32
    %c0_i32_0 = arith.constant 0 : i32
    %c0_i32_1 = arith.constant 0 : i32
    return %c0_i32, %c0_i32_0 : i32, i32
  }
  func.func @transform_6(%arg0: i32, %arg1: i32) -> (i32, i32) {
    %c0_i32 = arith.constant 0 : i32
    %c0_i32_0 = arith.constant 0 : i32
    %c0_i32_1 = arith.constant 0 : i32
    return %c0_i32, %c0_i32_0 : i32, i32
  }
  func.func @transform_7(%arg0: i32, %arg1: i32) -> (i32, i32) {
    %c0_i32 = arith.constant 0 : i32
    %c0_i32_0 = arith.constant 0 : i32
    %c0_i32_1 = arith.constant 0 : i32
    return %c0_i32, %c0_i32_0 : i32, i32
  }
  func.func @transform_8(%arg0: i32, %arg1: i32) -> (i32, i32) {
    %c0_i32 = arith.constant 0 : i32
    %c0_i32_0 = arith.constant 0 : i32
    %c0_i32_1 = arith.constant 0 : i32
    return %c0_i32, %c0_i32_0 : i32, i32
  }
  func.func @transform_9(%arg0: i32, %arg1: i32) -> (i32, i32) {
    %c0_i32 = arith.constant 0 : i32
    %c0_i32_0 = arith.constant 0 : i32
    %c0_i32_1 = arith.constant 0 : i32
    return %c0_i32, %c0_i32_0 : i32, i32
  }
  func.func @transform_10(%arg0: i32, %arg1: i32) -> (i32, i32) {
    %c0_i32 = arith.constant 0 : i32
    %c0_i32_0 = arith.constant 0 : i32
    %c0_i32_1 = arith.constant 0 : i32
    return %c0_i32, %c0_i32_0 : i32, i32
  }
  func.func @transform_11(%arg0: i32, %arg1: i32) -> (i32, i32) {
    %c0_i32 = arith.constant 0 : i32
    %c0_i32_0 = arith.constant 0 : i32
    %c0_i32_1 = arith.constant 0 : i32
    return %c0_i32, %c0_i32_0 : i32, i32
  }
  func.func @transform_12(%arg0: i32, %arg1: i32) -> (i32, i32) {
    %c0_i32 = arith.constant 0 : i32
    %c0_i32_0 = arith.constant 0 : i32
    %c0_i32_1 = arith.constant 0 : i32
    return %c0_i32, %c0_i32_0 : i32, i32
  }
  func.func @transform_13(%arg0: i32, %arg1: i32) -> (i32, i32) {
    %c0_i32 = arith.constant 0 : i32
    %c0_i32_0 = arith.constant 0 : i32
    %c0_i32_1 = arith.constant 0 : i32
    return %c0_i32, %c0_i32_0 : i32, i32
  }
  func.func @transform_14(%arg0: i32, %arg1: i32) -> (i32, i32) {
    %c0_i32 = arith.constant 0 : i32
    %c0_i32_0 = arith.constant 0 : i32
    %c0_i32_1 = arith.constant 0 : i32
    return %c0_i32, %c0_i32_0 : i32, i32
  }
  func.func @transform_15(%arg0: i32, %arg1: i32) -> (i32, i32) {
    %c0_i32 = arith.constant 0 : i32
    %c0_i32_0 = arith.constant 0 : i32
    %c0_i32_1 = arith.constant 0 : i32
    return %c0_i32, %c0_i32_0 : i32, i32
  }
  func.func @transform_16(%arg0: i32, %arg1: i32) -> (i32, i32) {
    %c0_i32 = arith.constant 0 : i32
    %c0_i32_0 = arith.constant 0 : i32
    %c0_i32_1 = arith.constant 0 : i32
    return %c0_i32, %c0_i32_0 : i32, i32
  }
  func.func @transform_17(%arg0: i32, %arg1: i32) -> (i32, i32) {
    %c0_i32 = arith.constant 0 : i32
    %c0_i32_0 = arith.constant 0 : i32
    %c0_i32_1 = arith.constant 0 : i32
    return %c0_i32, %c0_i32_0 : i32, i32
  }
  func.func @transform_18(%arg0: i32, %arg1: i32) -> (i32, i32) {
    %c0_i32 = arith.constant 0 : i32
    %c0_i32_0 = arith.constant 0 : i32
    %c0_i32_1 = arith.constant 0 : i32
    return %c0_i32, %c0_i32_0 : i32, i32
  }
  func.func @transform_19(%arg0: i32, %arg1: i32) -> (i32, i32, i32) {
    %c0_i32 = arith.constant 0 : i32
    %c0_i32_0 = arith.constant 0 : i32
    return %arg0, %arg1, %c0_i32 : i32, i32, i32
  }
}

</mosaic_0001>

<llo_original>
// kernel: tpu_custom_call.1
$region0: #{tpu_custom_call.1}
  #allocation0 [shape = 'u32[]', space=smem, size = 0x4, offset = 0x4, fixed_abs, tag = 'smem constant byte address 0x4 - core index']
  #allocation1 [shape = 'u32[144,128]{1,0:T(1,128)}', space=vmem, size = 0x12000, scoped, tag = 'internal scratch']
  %s0 = inlined_call_operand.vmem [shape: f32[2,8,32], index: 0, kind: input, shape index: {}]
  %s1 = inlined_call_operand.vmem [shape: f32[2,8,32], index: 1, kind: input, shape index: {}]
  %s2 = inlined_call_operand.hbm [shape: f32[2,1,8], index: 2, kind: input, shape index: {}]
  %s3 = inlined_call_operand.vmem [shape: bf16[32,32], index: 3, kind: input, shape index: {}]
  %s4 = inlined_call_operand.vmem [shape: f32[1,32], index: 4, kind: input, shape index: {}]
  %s5 = inlined_call_operand.vmem [shape: bf16[32,32], index: 5, kind: input, shape index: {}]
  %s6 = inlined_call_operand.hbm [shape: f32[1,32], index: 6, kind: input, shape index: {}]
  %s7 = inlined_call_operand.vmem [shape: bf16[32,32], index: 7, kind: input, shape index: {}]
  %s8 = inlined_call_operand.hbm [shape: f32[1,32], index: 8, kind: input, shape index: {}]
  %s9 = inlined_call_operand.vmem [shape: bf16[32,32], index: 9, kind: input, shape index: {}]
  %s10 = inlined_call_operand.hbm [shape: f32[1,32], index: 10, kind: input, shape index: {}]
  %s11 = inlined_call_operand.hbm [shape: f32[1,32], index: 11, kind: input, shape index: {}]
  %s12 = inlined_call_operand.hbm [shape: f32[1,32], index: 12, kind: input, shape index: {}]
  %s13 = inlined_call_operand.hbm [shape: f32[1,32], index: 13, kind: input, shape index: {}]
  %s14 = inlined_call_operand.vmem [shape: f32[1,32], index: 14, kind: input, shape index: {}]
  %s15 = inlined_call_operand.vmem [shape: bf16[32,128], index: 15, kind: input, shape index: {}]
  %s16 = inlined_call_operand.vmem [shape: f32[1,128], index: 16, kind: input, shape index: {}]
  %s17 = inlined_call_operand.vmem [shape: bf16[128,32], index: 17, kind: input, shape index: {}]
  %s18 = inlined_call_operand.vmem [shape: f32[1,32], index: 18, kind: input, shape index: {}]
  %s19 = inlined_call_operand.hbm [shape: f32[2,8,32], index: 19, kind: output, shape index: {}]
  %s20 = sld [smem:[#allocation0]]
  $region137: #{tpu_custom_call.1} parent=0
    _
  %s22 = ssub.s32 1, %s20
  %s23 = scalar_select 0, %s22, %s20
  $region1: #{tpu_custom_call.1} parent=0
    #allocation2 [shape = 'u8[1024]{0}', space=vmem, size = 0x400, scoped, tag = 'input window, operand 2']
    #allocation3 [shape = 's32[2]{0}', space=sflag, size = 0x8, scoped, tag = 'scoped memory for tpu_custom_call.1']
    #allocation4 [shape = 's32[2]{0}', space=sflag, size = 0x8, scoped, tag = 'scoped memory for tpu_custom_call.1']
    #allocation5 [shape = 'u8[512]{0}', space=vmem, size = 0x400, scoped, tag = 'input window, operand 6, single buffered']
    #allocation6 [shape = 's32[1]{0}', space=sflag, size = 0x4, scoped, tag = 'scoped memory for tpu_custom_call.1']
    #allocation7 [shape = 'u8[512]{0}', space=vmem, size = 0x400, scoped, tag = 'input window, operand 8, single buffered']
    #allocation8 [shape = 'u8[512]{0}', space=vmem, size = 0x400, scoped, tag = 'input window, operand 10, single buffered']
    #allocation9 [shape = 's32[1]{0}', space=sflag, size = 0x4, scoped, tag = 'scoped memory for tpu_custom_call.1']
    #allocation10 [shape = 'u8[512]{0}', space=vmem, size = 0x400, scoped, tag = 'input window, operand 11, single buffered']
    #allocation11 [shape = 'u8[512]{0}', space=vmem, size = 0x400, scoped, tag = 'input window, operand 12, single buffered']
    #allocation12 [shape = 's32[1]{0}', space=sflag, size = 0x4, scoped, tag = 'scoped memory for tpu_custom_call.1']
    #allocation13 [shape = 'u8[512]{0}', space=vmem, size = 0x400, scoped, tag = 'input window, operand 13, single buffered']
    #allocation14 [shape = 'u8[8192]{0}', space=vmem, size = 0x2000, scoped, tag = 'output window, operand 0']
    %24 = vsyncpa [#allocation3], 0
    %s25 = scalar_lea.sflag [#allocation3], 1
    %26 = vsyncpa %s25, 0
    %27 = vsyncpa [#allocation6], 0
    %28 = vsyncpa [#allocation9], 0
    %29 = vsyncpa [#allocation12], 0
    %30 = vsyncpa [#allocation4], 0
    %s31 = scalar_lea.sflag [#allocation4], 1
    %32 = vsyncpa %s31, 0
    loop: start=0, step=1, limit=4
    $region2: #{tpu_custom_call.1} parent=1 // loop_pre_header
      _
    $region3: #{tpu_custom_call.1} parent=1 // loop_header
      %s34 = sphi 0, %s38
      %p35 = scmp.ge.s32.totalorder %s34, 4
      %s41 = sphi 0, %s53
      %s42 = sphi 0, %s49
      %s43 = sphi 0, %s41
      %s44 = sphi 0, %s42
      %s45 = sphi 0, %s43
      %s46 = sphi 0, %s44
      %s56 = sphi 0, %s58
      %s59 = sphi 0, %s56
      %s60 = sphi 0, %s59
      %s76 = sphi 0, %s60
      %s84 = sphi 0, %s86
      %s87 = sphi 0, %s84
      %s88 = sphi 0, %s87
      %s104 = sphi 0, %s88
      %s110 = sphi 0, %s112
      %s113 = sphi 0, %s110
      %s114 = sphi 0, %s113
      %s130 = sphi 0, %s114
      %s134 = sphi 0, %s134
      %s136 = sphi 0, %s134
      %s137 = sphi 0, %s136
      %s151 = sphi 0, %s137
      %s155 = sphi 0, %s155
      %s157 = sphi 0, %s155
      %s158 = sphi 0, %s157
      %s172 = sphi 0, %s158
      %s176 = sphi 0, %s176
      %s178 = sphi 0, %s176
      %s179 = sphi 0, %s178
      %s193 = sphi 0, %s179
      %s197 = sphi 0, %s197
      %s199 = sphi 0, %s197
      %s200 = sphi 0, %s199
      %s214 = sphi 0, %s200
      %s218 = sphi 0, %s218
      %s220 = sphi 0, %s218
      %s221 = sphi 0, %s220
      %s235 = sphi 0, %s221
      %s239 = sphi 0, %s239
      %s241 = sphi 0, %s239
      %s242 = sphi 0, %s241
      %s256 = sphi 0, %s242
      %s260 = sphi 0, %s260
      %s262 = sphi 0, %s260
      %s263 = sphi 0, %s262
      %s277 = sphi 0, %s263
      %s281 = sphi 0, %s281
      %s283 = sphi 0, %s281
      %s284 = sphi 0, %s283
      %s298 = sphi 0, %s284
      %s302 = sphi 0, %s302
      %s304 = sphi 0, %s302
      %s305 = sphi 0, %s304
      %s319 = sphi 0, %s305
      %s323 = sphi 0, %s323
      %s325 = sphi 0, %s323
      %s326 = sphi 0, %s325
      %s340 = sphi 0, %s326
      %s344 = sphi 0, %s344
      %s346 = sphi 0, %s344
      %s347 = sphi 0, %s346
      %s361 = sphi 0, %s347
      %s365 = sphi 0, %s365
      %s367 = sphi 0, %s365
      %s368 = sphi 0, %s367
      %s382 = sphi 0, %s368
      %s386 = sphi 0, %s386
      %s388 = sphi 0, %s386
      %s389 = sphi 0, %s388
      %s403 = sphi 0, %s389
      %s407 = sphi 0, %s407
      %s409 = sphi 0, %s407
      %s410 = sphi 0, %s409
      %s424 = sphi 0, %s410
      %s428 = sphi 0, %s428
      %s430 = sphi 0, %s428
      %s431 = sphi 0, %s430
      %s445 = sphi 0, %s431
      %s449 = sphi 0, %s449
      %s451 = sphi 0, %s449
      %s452 = sphi 0, %s451
      %s466 = sphi 0, %s452
      %s474 = sphi 0, %s476
      %s477 = sphi 0, %s474
      %s478 = sphi 0, %s477
      %s494 = sphi 0, %s478
    $region4: #{tpu_custom_call.1} parent=1 // loop_header_branch
      %37 = sbr.rel (%p35) target = $region8
    $region5: #{tpu_custom_call.1} parent=1 // loop_body
      %s39 = ssub.s32 %s34, 1
      %s40 = ssub.s32 %s34, 2
      %s47 = sadd.s32 1, %s42
      %p48 = scmp.ge.s32.totalorder %s47, 1
      %s49 = scalar_select %p48, 0, %s47
      %s50 = sadd.s32 1, %s41
      %s51 = scalar_select %p48, %s50, %s41
      %p52 = scmp.ge.s32.totalorder %s51, 2
      %s53 = scalar_select %p52, 0, %s51
      %s54 = ssub.s32 %s41, %s53
      %p55 = scmp.eq.s32.totalorder %s54, 0
      %s57 = sadd.s32 %s56, 1
      %s58 = scalar_select %p55, %s56, %s57
      %p61 = pneg %p55
      %p62 = scmp.eq.s32.totalorder %s34, 1
      %p63 = por %p61, %p62
      %p64 = scmp.ne.s32.totalorder %s56, %s59
      %p65 = scmp.eq.s32.totalorder %s34, 0
      %p66 = por %p64, %p65
      %p67 = scmp.ne.s32.totalorder %s56, %s59
      %p68 = scmp.eq.s32.totalorder %s39, 1
      %p69 = por %p67, %p68
      %p70 = scmp.ne.s32.totalorder %s59, %s60
      %p71 = scmp.eq.s32.totalorder %s39, 0
      %p72 = por %p70, %p71
      %p73 = scmp.ne.s32.totalorder %s59, %s60
      %p74 = scmp.eq.s32.totalorder %s40, 1
      %p75 = por %p73, %p74
      %p77 = scmp.ne.s32.totalorder %s60, %s76
      %p78 = scmp.eq.s32.totalorder %s40, 0
      %p79 = por %p77, %p78
      %s80 = ssub.s32 %s41, %s53
      %s81 = ssub.s32 %s42, %s49
      %s82 = sor.u32 %s80, %s81
      %p83 = scmp.eq.s32.totalorder %s82, 0
      %s85 = sadd.s32 %s84, 1
      %s86 = scalar_select %p83, %s84, %s85
      %p89 = pneg %p83
      %p90 = scmp.eq.s32.totalorder %s34, 1
      %p91 = por %p89, %p90
      %p92 = scmp.ne.s32.totalorder %s84, %s87
      %p93 = scmp.eq.s32.totalorder %s34, 0
      %p94 = por %p92, %p93
      %p95 = scmp.ne.s32.totalorder %s84, %s87
      %p96 = scmp.eq.s32.totalorder %s39, 1
      %p97 = por %p95, %p96
      %p98 = scmp.ne.s32.totalorder %s87, %s88
      %p99 = scmp.eq.s32.totalorder %s39, 0
      %p100 = por %p98, %p99
      %p101 = scmp.ne.s32.totalorder %s87, %s88
      %p102 = scmp.eq.s32.totalorder %s40, 1
      %p103 = por %p101, %p102
      %p105 = scmp.ne.s32.totalorder %s88, %s104
      %p106 = scmp.eq.s32.totalorder %s40, 0
      %p107 = por %p105, %p106
      %s108 = ssub.s32 %s41, %s53
      %p109 = scmp.eq.s32.totalorder %s108, 0
      %s111 = sadd.s32 %s110, 1
      %s112 = scalar_select %p109, %s110, %s111
      %p115 = pneg %p109
      %p116 = scmp.eq.s32.totalorder %s34, 1
      %p117 = por %p115, %p116
      %p118 = scmp.ne.s32.totalorder %s110, %s113
      %p119 = scmp.eq.s32.totalorder %s34, 0
      %p120 = por %p118, %p119
      %p121 = scmp.ne.s32.totalorder %s110, %s113
      %p122 = scmp.eq.s32.totalorder %s39, 1
      %p123 = por %p121, %p122
      %p124 = scmp.ne.s32.totalorder %s113, %s114
      %p125 = scmp.eq.s32.totalorder %s39, 0
      %p126 = por %p124, %p125
      %p127 = scmp.ne.s32.totalorder %s113, %s114
      %p128 = scmp.eq.s32.totalorder %s40, 1
      %p129 = por %p127, %p128
      %p131 = scmp.ne.s32.totalorder %s114, %s130
      %p132 = scmp.eq.s32.totalorder %s40, 0
      %p133 = por %p131, %p132
      %s135 = sadd.s32 %s134, 1
      %p138 = scmp.eq.s32.totalorder %s34, 1
      %p139 = scmp.ne.s32.totalorder %s134, %s136
      %p140 = scmp.eq.s32.totalorder %s34, 0
      %p141 = por %p139, %p140
      %p142 = scmp.ne.s32.totalorder %s134, %s136
      %p143 = scmp.eq.s32.totalorder %s39, 1
      %p144 = por %p142, %p143
      %p145 = scmp.ne.s32.totalorder %s136, %s137
      %p146 = scmp.eq.s32.totalorder %s39, 0
      %p147 = por %p145, %p146
      %p148 = scmp.ne.s32.totalorder %s136, %s137
      %p149 = scmp.eq.s32.totalorder %s40, 1
      %p150 = por %p148, %p149
      %p152 = scmp.ne.s32.totalorder %s137, %s151
      %p153 = scmp.eq.s32.totalorder %s40, 0
      %p154 = por %p152, %p153
      %s156 = sadd.s32 %s155, 1
      %p159 = scmp.eq.s32.totalorder %s34, 1
      %p160 = scmp.ne.s32.totalorder %s155, %s157
      %p161 = scmp.eq.s32.totalorder %s34, 0
      %p162 = por %p160, %p161
      %p163 = scmp.ne.s32.totalorder %s155, %s157
      %p164 = scmp.eq.s32.totalorder %s39, 1
      %p165 = por %p163, %p164
      %p166 = scmp.ne.s32.totalorder %s157, %s158
      %p167 = scmp.eq.s32.totalorder %s39, 0
      %p168 = por %p166, %p167
      %p169 = scmp.ne.s32.totalorder %s157, %s158
      %p170 = scmp.eq.s32.totalorder %s40, 1
      %p171 = por %p169, %p170
      %p173 = scmp.ne.s32.totalorder %s158, %s172
      %p174 = scmp.eq.s32.totalorder %s40, 0
      %p175 = por %p173, %p174
      %s177 = sadd.s32 %s176, 1
      %p180 = scmp.eq.s32.totalorder %s34, 1
      %p181 = scmp.ne.s32.totalorder %s176, %s178
      %p182 = scmp.eq.s32.totalorder %s34, 0
      %p183 = por %p181, %p182
      %p184 = scmp.ne.s32.totalorder %s176, %s178
      %p185 = scmp.eq.s32.totalorder %s39, 1
      %p186 = por %p184, %p185
      %p187 = scmp.ne.s32.totalorder %s178, %s179
      %p188 = scmp.eq.s32.totalorder %s39, 0
      %p189 = por %p187, %p188
      %p190 = scmp.ne.s32.totalorder %s178, %s179
      %p191 = scmp.eq.s32.totalorder %s40, 1
      %p192 = por %p190, %p191
      %p194 = scmp.ne.s32.totalorder %s179, %s193
      %p195 = scmp.eq.s32.totalorder %s40, 0
      %p196 = por %p194, %p195
      %s198 = sadd.s32 %s197, 1
      %p201 = scmp.eq.s32.totalorder %s34, 1
      %p202 = scmp.ne.s32.totalorder %s197, %s199
      %p203 = scmp.eq.s32.totalorder %s34, 0
      %p204 = por %p202, %p203
      %p205 = scmp.ne.s32.totalorder %s197, %s199
      %p206 = scmp.eq.s32.totalorder %s39, 1
      %p207 = por %p205, %p206
      %p208 = scmp.ne.s32.totalorder %s199, %s200
      %p209 = scmp.eq.s32.totalorder %s39, 0
      %p210 = por %p208, %p209
      %p211 = scmp.ne.s32.totalorder %s199, %s200
      %p212 = scmp.eq.s32.totalorder %s40, 1
      %p213 = por %p211, %p212
      %p215 = scmp.ne.s32.totalorder %s200, %s214
      %p216 = scmp.eq.s32.totalorder %s40, 0
      %p217 = por %p215, %p216
      %s219 = sadd.s32 %s218, 1
      %p222 = scmp.eq.s32.totalorder %s34, 1
      %p223 = scmp.ne.s32.totalorder %s218, %s220
      %p224 = scmp.eq.s32.totalorder %s34, 0
      %p225 = por %p223, %p224
      %p226 = scmp.ne.s32.totalorder %s218, %s220
      %p227 = scmp.eq.s32.totalorder %s39, 1
      %p228 = por %p226, %p227
      %p229 = scmp.ne.s32.totalorder %s220, %s221
      %p230 = scmp.eq.s32.totalorder %s39, 0
      %p231 = por %p229, %p230
      %p232 = scmp.ne.s32.totalorder %s220, %s221
      %p233 = scmp.eq.s32.totalorder %s40, 1
      %p234 = por %p232, %p233
      %p236 = scmp.ne.s32.totalorder %s221, %s235
      %p237 = scmp.eq.s32.totalorder %s40, 0
      %p238 = por %p236, %p237
      %s240 = sadd.s32 %s239, 1
      %p243 = scmp.eq.s32.totalorder %s34, 1
      %p244 = scmp.ne.s32.totalorder %s239, %s241
      %p245 = scmp.eq.s32.totalorder %s34, 0
      %p246 = por %p244, %p245
      %p247 = scmp.ne.s32.totalorder %s239, %s241
      %p248 = scmp.eq.s32.totalorder %s39, 1
      %p249 = por %p247, %p248
      %p250 = scmp.ne.s32.totalorder %s241, %s242
      %p251 = scmp.eq.s32.totalorder %s39, 0
      %p252 = por %p250, %p251
      %p253 = scmp.ne.s32.totalorder %s241, %s242
      %p254 = scmp.eq.s32.totalorder %s40, 1
      %p255 = por %p253, %p254
      %p257 = scmp.ne.s32.totalorder %s242, %s256
      %p258 = scmp.eq.s32.totalorder %s40, 0
      %p259 = por %p257, %p258
      %s261 = sadd.s32 %s260, 1
      %p264 = scmp.eq.s32.totalorder %s34, 1
      %p265 = scmp.ne.s32.totalorder %s260, %s262
      %p266 = scmp.eq.s32.totalorder %s34, 0
      %p267 = por %p265, %p266
      %p268 = scmp.ne.s32.totalorder %s260, %s262
      %p269 = scmp.eq.s32.totalorder %s39, 1
      %p270 = por %p268, %p269
      %p271 = scmp.ne.s32.totalorder %s262, %s263
      %p272 = scmp.eq.s32.totalorder %s39, 0
      %p273 = por %p271, %p272
      %p274 = scmp.ne.s32.totalorder %s262, %s263
      %p275 = scmp.eq.s32.totalorder %s40, 1
      %p276 = por %p274, %p275
      %p278 = scmp.ne.s32.totalorder %s263, %s277
      %p279 = scmp.eq.s32.totalorder %s40, 0
      %p280 = por %p278, %p279
      %s282 = sadd.s32 %s281, 1
      %p285 = scmp.eq.s32.totalorder %s34, 1
      %p286 = scmp.ne.s32.totalorder %s281, %s283
      %p287 = scmp.eq.s32.totalorder %s34, 0
      %p288 = por %p286, %p287
      %p289 = scmp.ne.s32.totalorder %s281, %s283
      %p290 = scmp.eq.s32.totalorder %s39, 1
      %p291 = por %p289, %p290
      %p292 = scmp.ne.s32.totalorder %s283, %s284
      %p293 = scmp.eq.s32.totalorder %s39, 0
      %p294 = por %p292, %p293
      %p295 = scmp.ne.s32.totalorder %s283, %s284
      %p296 = scmp.eq.s32.totalorder %s40, 1
      %p297 = por %p295, %p296
      %p299 = scmp.ne.s32.totalorder %s284, %s298
      %p300 = scmp.eq.s32.totalorder %s40, 0
      %p301 = por %p299, %p300
      %s303 = sadd.s32 %s302, 1
      %p306 = scmp.eq.s32.totalorder %s34, 1
      %p307 = scmp.ne.s32.totalorder %s302, %s304
      %p308 = scmp.eq.s32.totalorder %s34, 0
      %p309 = por %p307, %p308
      %p310 = scmp.ne.s32.totalorder %s302, %s304
      %p311 = scmp.eq.s32.totalorder %s39, 1
      %p312 = por %p310, %p311
      %p313 = scmp.ne.s32.totalorder %s304, %s305
      %p314 = scmp.eq.s32.totalorder %s39, 0
      %p315 = por %p313, %p314
      %p316 = scmp.ne.s32.totalorder %s304, %s305
      %p317 = scmp.eq.s32.totalorder %s40, 1
      %p318 = por %p316, %p317
      %p320 = scmp.ne.s32.totalorder %s305, %s319
      %p321 = scmp.eq.s32.totalorder %s40, 0
      %p322 = por %p320, %p321
      %s324 = sadd.s32 %s323, 1
      %p327 = scmp.eq.s32.totalorder %s34, 1
      %p328 = scmp.ne.s32.totalorder %s323, %s325
      %p329 = scmp.eq.s32.totalorder %s34, 0
      %p330 = por %p328, %p329
      %p331 = scmp.ne.s32.totalorder %s323, %s325
      %p332 = scmp.eq.s32.totalorder %s39, 1
      %p333 = por %p331, %p332
      %p334 = scmp.ne.s32.totalorder %s325, %s326
      %p335 = scmp.eq.s32.totalorder %s39, 0
      %p336 = por %p334, %p335
      %p337 = scmp.ne.s32.totalorder %s325, %s326
      %p338 = scmp.eq.s32.totalorder %s40, 1
      %p339 = por %p337, %p338
      %p341 = scmp.ne.s32.totalorder %s326, %s340
      %p342 = scmp.eq.s32.totalorder %s40, 0
      %p343 = por %p341, %p342
      %s345 = sadd.s32 %s344, 1
      %p348 = scmp.eq.s32.totalorder %s34, 1
      %p349 = scmp.ne.s32.totalorder %s344, %s346
      %p350 = scmp.eq.s32.totalorder %s34, 0
      %p351 = por %p349, %p350
      %p352 = scmp.ne.s32.totalorder %s344, %s346
      %p353 = scmp.eq.s32.totalorder %s39, 1
      %p354 = por %p352, %p353
      %p355 = scmp.ne.s32.totalorder %s346, %s347
      %p356 = scmp.eq.s32.totalorder %s39, 0
      %p357 = por %p355, %p356
      %p358 = scmp.ne.s32.totalorder %s346, %s347
      %p359 = scmp.eq.s32.totalorder %s40, 1
      %p360 = por %p358, %p359
      %p362 = scmp.ne.s32.totalorder %s347, %s361
      %p363 = scmp.eq.s32.totalorder %s40, 0
      %p364 = por %p362, %p363
      %s366 = sadd.s32 %s365, 1
      %p369 = scmp.eq.s32.totalorder %s34, 1
      %p370 = scmp.ne.s32.totalorder %s365, %s367
      %p371 = scmp.eq.s32.totalorder %s34, 0
      %p372 = por %p370, %p371
      %p373 = scmp.ne.s32.totalorder %s365, %s367
      %p374 = scmp.eq.s32.totalorder %s39, 1
      %p375 = por %p373, %p374
      %p376 = scmp.ne.s32.totalorder %s367, %s368
      %p377 = scmp.eq.s32.totalorder %s39, 0
      %p378 = por %p376, %p377
      %p379 = scmp.ne.s32.totalorder %s367, %s368
      %p380 = scmp.eq.s32.totalorder %s40, 1
      %p381 = por %p379, %p380
      %p383 = scmp.ne.s32.totalorder %s368, %s382
      %p384 = scmp.eq.s32.totalorder %s40, 0
      %p385 = por %p383, %p384
      %s387 = sadd.s32 %s386, 1
      %p390 = scmp.eq.s32.totalorder %s34, 1
      %p391 = scmp.ne.s32.totalorder %s386, %s388
      %p392 = scmp.eq.s32.totalorder %s34, 0
      %p393 = por %p391, %p392
      %p394 = scmp.ne.s32.totalorder %s386, %s388
      %p395 = scmp.eq.s32.totalorder %s39, 1
      %p396 = por %p394, %p395
      %p397 = scmp.ne.s32.totalorder %s388, %s389
      %p398 = scmp.eq.s32.totalorder %s39, 0
      %p399 = por %p397, %p398
      %p400 = scmp.ne.s32.totalorder %s388, %s389
      %p401 = scmp.eq.s32.totalorder %s40, 1
      %p402 = por %p400, %p401
      %p404 = scmp.ne.s32.totalorder %s389, %s403
      %p405 = scmp.eq.s32.totalorder %s40, 0
      %p406 = por %p404, %p405
      %s408 = sadd.s32 %s407, 1
      %p411 = scmp.eq.s32.totalorder %s34, 1
      %p412 = scmp.ne.s32.totalorder %s407, %s409
      %p413 = scmp.eq.s32.totalorder %s34, 0
      %p414 = por %p412, %p413
      %p415 = scmp.ne.s32.totalorder %s407, %s409
      %p416 = scmp.eq.s32.totalorder %s39, 1
      %p417 = por %p415, %p416
      %p418 = scmp.ne.s32.totalorder %s409, %s410
      %p419 = scmp.eq.s32.totalorder %s39, 0
      %p420 = por %p418, %p419
      %p421 = scmp.ne.s32.totalorder %s409, %s410
      %p422 = scmp.eq.s32.totalorder %s40, 1
      %p423 = por %p421, %p422
      %p425 = scmp.ne.s32.totalorder %s410, %s424
      %p426 = scmp.eq.s32.totalorder %s40, 0
      %p427 = por %p425, %p426
      %s429 = sadd.s32 %s428, 1
      %p432 = scmp.eq.s32.totalorder %s34, 1
      %p433 = scmp.ne.s32.totalorder %s428, %s430
      %p434 = scmp.eq.s32.totalorder %s34, 0
      %p435 = por %p433, %p434
      %p436 = scmp.ne.s32.totalorder %s428, %s430
      %p437 = scmp.eq.s32.totalorder %s39, 1
      %p438 = por %p436, %p437
      %p439 = scmp.ne.s32.totalorder %s430, %s431
      %p440 = scmp.eq.s32.totalorder %s39, 0
      %p441 = por %p439, %p440
      %p442 = scmp.ne.s32.totalorder %s430, %s431
      %p443 = scmp.eq.s32.totalorder %s40, 1
      %p444 = por %p442, %p443
      %p446 = scmp.ne.s32.totalorder %s431, %s445
      %p447 = scmp.eq.s32.totalorder %s40, 0
      %p448 = por %p446, %p447
      %s450 = sadd.s32 %s449, 1
      %p453 = scmp.eq.s32.totalorder %s34, 1
      %p454 = scmp.ne.s32.totalorder %s449, %s451
      %p455 = scmp.eq.s32.totalorder %s34, 0
      %p456 = por %p454, %p455
      %p457 = scmp.ne.s32.totalorder %s449, %s451
      %p458 = scmp.eq.s32.totalorder %s39, 1
      %p459 = por %p457, %p458
      %p460 = scmp.ne.s32.totalorder %s451, %s452
      %p461 = scmp.eq.s32.totalorder %s39, 0
      %p462 = por %p460, %p461
      %p463 = scmp.ne.s32.totalorder %s451, %s452
      %p464 = scmp.eq.s32.totalorder %s40, 1
      %p465 = por %p463, %p464
      %p467 = scmp.ne.s32.totalorder %s452, %s466
      %p468 = scmp.eq.s32.totalorder %s40, 0
      %p469 = por %p467, %p468
      %s470 = ssub.s32 %s41, %s53
      %s471 = ssub.s32 %s42, %s49
      %s472 = sor.u32 %s470, %s471
      %p473 = scmp.eq.s32.totalorder %s472, 0
      %s475 = sadd.s32 %s474, 1
      %s476 = scalar_select %p473, %s474, %s475
      %p479 = pneg %p473
      %p480 = scmp.eq.s32.totalorder %s34, 1
      %p481 = por %p479, %p480
      %p482 = scmp.ne.s32.totalorder %s474, %s477
      %p483 = scmp.eq.s32.totalorder %s34, 0
      %p484 = por %p482, %p483
      %p485 = scmp.ne.s32.totalorder %s474, %s477
      %p486 = scmp.eq.s32.totalorder %s39, 1
      %p487 = por %p485, %p486
      %p488 = scmp.ne.s32.totalorder %s477, %s478
      %p489 = scmp.eq.s32.totalorder %s39, 0
      %p490 = por %p488, %p489
      %p491 = scmp.ne.s32.totalorder %s477, %s478
      %p492 = scmp.eq.s32.totalorder %s40, 1
      %p493 = por %p491, %p492
      %p495 = scmp.ne.s32.totalorder %s478, %s494
      %p496 = scmp.eq.s32.totalorder %s40, 0
      %p497 = por %p495, %p496
      %p498 = scmp.le.s32.totalorder 1, %s34
      %p499 = scmp.lt.s32.totalorder %s34, 3
      %p500 = pnand %p498, %p499
      %p501 = pneg %p500
      // Predicated region
      $region9: #{tpu_custom_call.1} parent=5 // pred_check
        _
      $region10: #{tpu_custom_call.1} parent=5 // pred_check_branch
        %503 = sbr.rel (%p500) target = $region12
      $region11: #{tpu_custom_call.1} parent=5 // pred_region
        %s504 = ssub.s32 %s34, 1
        // Predicated region
        $region13: #{tpu_custom_call.1} parent=11 // pred_check
          %p505 = pneg %p147
        $region14: #{tpu_custom_call.1} parent=11 // pred_check_branch
          %507 = sbr.rel (%p505) target = $region16
        $region15: #{tpu_custom_call.1} parent=11 // pred_region
          _
        $region16: #{tpu_custom_call.1} parent=11 // pred_fallthru
          _
        // Predicated region
        $region17: #{tpu_custom_call.1} parent=11 // pred_check
          %p508 = pneg %p168
        $region18: #{tpu_custom_call.1} parent=11 // pred_check_branch
          %510 = sbr.rel (%p508) target = $region20
        $region19: #{tpu_custom_call.1} parent=11 // pred_region
          _
        $region20: #{tpu_custom_call.1} parent=11 // pred_fallthru
          _
        // Predicated region
        $region21: #{tpu_custom_call.1} parent=11 // pred_check
          %p511 = pneg %p189
        $region22: #{tpu_custom_call.1} parent=11 // pred_check_branch
          %513 = sbr.rel (%p511) target = $region24
        $region23: #{tpu_custom_call.1} parent=11 // pred_region
          _
        $region24: #{tpu_custom_call.1} parent=11 // pred_fallthru
          _
        // Predicated region
        $region25: #{tpu_custom_call.1} parent=11 // pred_check
          %p514 = pneg %p210
        $region26: #{tpu_custom_call.1} parent=11 // pred_check_branch
          %516 = sbr.rel (%p514) target = $region28
        $region27: #{tpu_custom_call.1} parent=11 // pred_region
          %s518 = ssub.s32 16, 16
          %519 = vsyncadd [#allocation6], %s518
          %s521 = sshll.u32 [#allocation5], 4
          %s522 = int_to_ptr.vmem [resolvable:$true] %s521
          %524 = dma.hbm_to_vmem [thread:$0]  %s6, 16, %s522, [#allocation6]
        $region28: #{tpu_custom_call.1} parent=11 // pred_fallthru
          _
        // Predicated region
        $region29: #{tpu_custom_call.1} parent=11 // pred_check
          %p525 = pneg %p231
        $region30: #{tpu_custom_call.1} parent=11 // pred_check_branch
          %527 = sbr.rel (%p525) target = $region32
        $region31: #{tpu_custom_call.1} parent=11 // pred_region
          _
        $region32: #{tpu_custom_call.1} parent=11 // pred_fallthru
          _
        // Predicated region
        $region33: #{tpu_custom_call.1} parent=11 // pred_check
          %p528 = pneg %p252
        $region34: #{tpu_custom_call.1} parent=11 // pred_check_branch
          %530 = sbr.rel (%p528) target = $region36
        $region35: #{tpu_custom_call.1} parent=11 // pred_region
          %s532 = ssub.s32 16, 16
          %533 = vsyncadd [#allocation6], %s532
          %s535 = sshll.u32 [#allocation7], 4
          %s536 = int_to_ptr.vmem [resolvable:$true] %s535
          %538 = dma.hbm_to_vmem [thread:$0]  %s8, 16, %s536, [#allocation6]
        $region36: #{tpu_custom_call.1} parent=11 // pred_fallthru
          _
        // Predicated region
        $region37: #{tpu_custom_call.1} parent=11 // pred_check
          %p539 = pneg %p273
        $region38: #{tpu_custom_call.1} parent=11 // pred_check_branch
          %541 = sbr.rel (%p539) target = $region40
        $region39: #{tpu_custom_call.1} parent=11 // pred_region
          _
        $region40: #{tpu_custom_call.1} parent=11 // pred_fallthru
          _
        // Predicated region
        $region41: #{tpu_custom_call.1} parent=11 // pred_check
          %p542 = pneg %p294
        $region42: #{tpu_custom_call.1} parent=11 // pred_check_branch
          %544 = sbr.rel (%p542) target = $region44
        $region43: #{tpu_custom_call.1} parent=11 // pred_region
          %s546 = ssub.s32 16, 16
          %547 = vsyncadd [#allocation9], %s546
          %s549 = sshll.u32 [#allocation8], 4
          %s550 = int_to_ptr.vmem [resolvable:$true] %s549
          %552 = dma.hbm_to_vmem [thread:$0]  %s10, 16, %s550, [#allocation9]
        $region44: #{tpu_custom_call.1} parent=11 // pred_fallthru
          _
        // Predicated region
        $region45: #{tpu_custom_call.1} parent=11 // pred_check
          %p553 = pneg %p315
        $region46: #{tpu_custom_call.1} parent=11 // pred_check_branch
          %555 = sbr.rel (%p553) target = $region48
        $region47: #{tpu_custom_call.1} parent=11 // pred_region
          %s557 = ssub.s32 16, 16
          %558 = vsyncadd [#allocation9], %s557
          %s560 = sshll.u32 [#allocation10], 4
          %s561 = int_to_ptr.vmem [resolvable:$true] %s560
          %563 = dma.hbm_to_vmem [thread:$0]  %s11, 16, %s561, [#allocation9]
        $region48: #{tpu_custom_call.1} parent=11 // pred_fallthru
          _
        // Predicated region
        $region49: #{tpu_custom_call.1} parent=11 // pred_check
          %p564 = pneg %p336
        $region50: #{tpu_custom_call.1} parent=11 // pred_check_branch
          %566 = sbr.rel (%p564) target = $region52
        $region51: #{tpu_custom_call.1} parent=11 // pred_region
          %s568 = ssub.s32 16, 16
          %569 = vsyncadd [#allocation12], %s568
          %s571 = sshll.u32 [#allocation11], 4
          %s572 = int_to_ptr.vmem [resolvable:$true] %s571
          %574 = dma.hbm_to_vmem [thread:$0]  %s12, 16, %s572, [#allocation12]
        $region52: #{tpu_custom_call.1} parent=11 // pred_fallthru
          _
        // Predicated region
        $region53: #{tpu_custom_call.1} parent=11 // pred_check
          %p575 = pneg %p357
        $region54: #{tpu_custom_call.1} parent=11 // pred_check_branch
          %577 = sbr.rel (%p575) target = $region56
        $region55: #{tpu_custom_call.1} parent=11 // pred_region
          %s579 = ssub.s32 16, 16
          %580 = vsyncadd [#allocation12], %s579
          %s582 = sshll.u32 [#allocation13], 4
          %s583 = int_to_ptr.vmem [resolvable:$true] %s582
          %585 = dma.hbm_to_vmem [thread:$0]  %s13, 16, %s583, [#allocation12]
        $region56: #{tpu_custom_call.1} parent=11 // pred_fallthru
          _
        // Predicated region
        $region57: #{tpu_custom_call.1} parent=11 // pred_check
          %p586 = pneg %p378
        $region58: #{tpu_custom_call.1} parent=11 // pred_check_branch
          %588 = sbr.rel (%p586) target = $region60
        $region59: #{tpu_custom_call.1} parent=11 // pred_region
          _
        $region60: #{tpu_custom_call.1} parent=11 // pred_fallthru
          _
        // Predicated region
        $region61: #{tpu_custom_call.1} parent=11 // pred_check
          %p589 = pneg %p399
        $region62: #{tpu_custom_call.1} parent=11 // pred_check_branch
          %591 = sbr.rel (%p589) target = $region64
        $region63: #{tpu_custom_call.1} parent=11 // pred_region
          _
        $region64: #{tpu_custom_call.1} parent=11 // pred_fallthru
          _
        // Predicated region
        $region65: #{tpu_custom_call.1} parent=11 // pred_check
          %p592 = pneg %p420
        $region66: #{tpu_custom_call.1} parent=11 // pred_check_branch
          %594 = sbr.rel (%p592) target = $region68
        $region67: #{tpu_custom_call.1} parent=11 // pred_region
          _
        $region68: #{tpu_custom_call.1} parent=11 // pred_fallthru
          _
        // Predicated region
        $region69: #{tpu_custom_call.1} parent=11 // pred_check
          %p595 = pneg %p441
        $region70: #{tpu_custom_call.1} parent=11 // pred_check_branch
          %597 = sbr.rel (%p595) target = $region72
        $region71: #{tpu_custom_call.1} parent=11 // pred_region
          _
        $region72: #{tpu_custom_call.1} parent=11 // pred_fallthru
          _
        // Predicated region
        $region73: #{tpu_custom_call.1} parent=11 // pred_check
          %p598 = pneg %p462
        $region74: #{tpu_custom_call.1} parent=11 // pred_check_branch
          %600 = sbr.rel (%p598) target = $region76
        $region75: #{tpu_custom_call.1} parent=11 // pred_region
          _
        $region76: #{tpu_custom_call.1} parent=11 // pred_fallthru
          _
      $region12: #{tpu_custom_call.1} parent=5 // pred_fallthru
        _
      %p601 = scmp.lt.s32.totalorder %s34, 2
      // Predicated region
      $region77: #{tpu_custom_call.1} parent=5 // pred_check
        %p602 = pneg %p601
      $region78: #{tpu_custom_call.1} parent=5 // pred_check_branch
        %604 = sbr.rel (%p602) target = $region80
      $region79: #{tpu_custom_call.1} parent=5 // pred_region
        // Predicated region
        $region81: #{tpu_custom_call.1} parent=79 // pred_check
          %p605 = pneg %p66
        $region82: #{tpu_custom_call.1} parent=79 // pred_check_branch
          %607 = sbr.rel (%p605) target = $region84
        $region83: #{tpu_custom_call.1} parent=79 // pred_region
          %p608 = scmp.lt.s32.totalorder %s41, 1
          %s609 = scalar_select %p608, %s41, 1
          %s610 = smul.addr %s609, 8
          %s611 = scalar_lea.vmem %s0, %s610
        $region84: #{tpu_custom_call.1} parent=79 // pred_fallthru
          _
        // Predicated region
        $region85: #{tpu_custom_call.1} parent=79 // pred_check
          %p612 = pneg %p94
        $region86: #{tpu_custom_call.1} parent=79 // pred_check_branch
          %614 = sbr.rel (%p612) target = $region88
        $region87: #{tpu_custom_call.1} parent=79 // pred_region
          %p615 = scmp.lt.s32.totalorder %s41, 1
          %s616 = scalar_select %p615, %s41, 1
          %p617 = scmp.lt.s32.totalorder %s42, 0
          %s618 = scalar_select %p617, %s42, 0
          %s619 = sadd.s32 %s618, %s616
          %s620 = smul.addr %s619, 8
          %s621 = scalar_lea.vmem %s1, %s620
        $region88: #{tpu_custom_call.1} parent=79 // pred_fallthru
          _
        // Predicated region
        $region89: #{tpu_custom_call.1} parent=79 // pred_check
          %p622 = pneg %p120
        $region90: #{tpu_custom_call.1} parent=79 // pred_check_branch
          %624 = sbr.rel (%p622) target = $region92
        $region91: #{tpu_custom_call.1} parent=79 // pred_region
          %s625 = sand.u32 %s110, 1
          %s626 = scalar_lea.sflag [#allocation3], %s625
          %s627 = sand.u32 %s110, 1
          %s628 = scalar_lea.vmem [#allocation2], %s627
          %s630 = ssub.s32 16, 16
          %631 = vsyncadd %s626, %s630
          %s632 = smul.addr %s41, 16
          %s633 = scalar_lea.hbm %s2, %s632
          %s635 = sshll.u32 %s628, 4
          %s636 = int_to_ptr.vmem [resolvable:$true] %s635
          %638 = dma.hbm_to_vmem [thread:$0]  %s633, 16, %s636, %s626
        $region92: #{tpu_custom_call.1} parent=79 // pred_fallthru
          _
      $region80: #{tpu_custom_call.1} parent=5 // pred_fallthru
        _
      %p639 = scmp.le.s32.totalorder 1, %s34
      %p640 = scmp.lt.s32.totalorder %s34, 3
      %p641 = pnand %p639, %p640
      %p642 = pneg %p641
      // Predicated region
      $region93: #{tpu_custom_call.1} parent=5 // pred_check
        _
      $region94: #{tpu_custom_call.1} parent=5 // pred_check_branch
        %644 = sbr.rel (%p641) target = $region96
      $region95: #{tpu_custom_call.1} parent=5 // pred_region
        %s645 = ssub.s32 %s34, 1
        %s646 = sand.u32 %s113, 1
        %s647 = scalar_lea.sflag [#allocation3], %s646
        %s648 = sand.u32 %s113, 1
        %s649 = scalar_lea.vmem [#allocation2], %s648
        // Predicated region
        $region97: #{tpu_custom_call.1} parent=95 // pred_check
          %p650 = pneg %p126
        $region98: #{tpu_custom_call.1} parent=95 // pred_check_branch
          %652 = sbr.rel (%p650) target = $region100
        $region99: #{tpu_custom_call.1} parent=95 // pred_region
          %653 = dma.done %s647, 16
        $region100: #{tpu_custom_call.1} parent=95 // pred_fallthru
          _
        // Predicated region
        $region101: #{tpu_custom_call.1} parent=95 // pred_check
          %p654 = pneg %p210
        $region102: #{tpu_custom_call.1} parent=95 // pred_check_branch
          %656 = sbr.rel (%p654) target = $region104
        $region103: #{tpu_custom_call.1} parent=95 // pred_region
          %657 = dma.done [#allocation6], 16
        $region104: #{tpu_custom_call.1} parent=95 // pred_fallthru
          _
        // Predicated region
        $region105: #{tpu_custom_call.1} parent=95 // pred_check
          %p658 = pneg %p252
        $region106: #{tpu_custom_call.1} parent=95 // pred_check_branch
          %660 = sbr.rel (%p658) target = $region108
        $region107: #{tpu_custom_call.1} parent=95 // pred_region
          %661 = dma.done [#allocation6], 16
        $region108: #{tpu_custom_call.1} parent=95 // pred_fallthru
          _
        // Predicated region
        $region109: #{tpu_custom_call.1} parent=95 // pred_check
          %p662 = pneg %p294
        $region110: #{tpu_custom_call.1} parent=95 // pred_check_branch
          %664 = sbr.rel (%p662) target = $region112
        $region111: #{tpu_custom_call.1} parent=95 // pred_region
          %665 = dma.done [#allocation9], 16
        $region112: #{tpu_custom_call.1} parent=95 // pred_fallthru
          _
        // Predicated region
        $region113: #{tpu_custom_call.1} parent=95 // pred_check
          %p666 = pneg %p315
        $region114: #{tpu_custom_call.1} parent=95 // pred_check_branch
          %668 = sbr.rel (%p666) target = $region116
        $region115: #{tpu_custom_call.1} parent=95 // pred_region
          %669 = dma.done [#allocation9], 16
        $region116: #{tpu_custom_call.1} parent=95 // pred_fallthru
          _
        // Predicated region
        $region117: #{tpu_custom_call.1} parent=95 // pred_check
          %p670 = pneg %p336
        $region118: #{tpu_custom_call.1} parent=95 // pred_check_branch
          %672 = sbr.rel (%p670) target = $region120
        $region119: #{tpu_custom_call.1} parent=95 // pred_region
          %673 = dma.done [#allocation12], 16
        $region120: #{tpu_custom_call.1} parent=95 // pred_fallthru
          _
        // Predicated region
        $region121: #{tpu_custom_call.1} parent=95 // pred_check
          %p674 = pneg %p357
        $region122: #{tpu_custom_call.1} parent=95 // pred_check_branch
          %676 = sbr.rel (%p674) target = $region124
        $region123: #{tpu_custom_call.1} parent=95 // pred_region
          %677 = dma.done [#allocation12], 16
        $region124: #{tpu_custom_call.1} parent=95 // pred_fallthru
          _
        %p678 = scmp.lt.s32.totalorder %s43, 1
        %s679 = scalar_select %p678, %s43, 1
        %s680 = smul.addr %s679, 8
        %s681 = scalar_lea.vmem %s0, %s680
        %p682 = pneg %p72
        %p683 = pneg %p69
        %p684 = scmp.lt.s32.totalorder %s43, 1
        %s685 = scalar_select %p684, %s43, 1
        %p686 = scmp.lt.s32.totalorder %s44, 0
        %s687 = scalar_select %p686, %s44, 0
        %s688 = sadd.s32 %s687, %s685
        %s689 = smul.addr %s688, 8
        %s690 = scalar_lea.vmem %s1, %s689
        %p691 = pneg %p100
        %p692 = pneg %p97
        %s693 = sand.u32 %s113, 1
        %s694 = scalar_lea.sflag [#allocation3], %s693
        %s695 = sand.u32 %s113, 1
        %s696 = scalar_lea.vmem [#allocation2], %s695
        %p697 = pneg %p126
        %p698 = pneg %p123
        %p699 = pneg %p147
        %p700 = pneg %p144
        %p701 = pneg %p168
        %p702 = pneg %p165
        %p703 = pneg %p189
        %p704 = pneg %p186
        %p705 = pneg %p210
        %p706 = pneg %p207
        %p707 = pneg %p231
        %p708 = pneg %p228
        %p709 = pneg %p252
        %p710 = pneg %p249
        %p711 = pneg %p273
        %p712 = pneg %p270
        %p713 = pneg %p294
        %p714 = pneg %p291
        %p715 = pneg %p315
        %p716 = pneg %p312
        %p717 = pneg %p336
        %p718 = pneg %p333
        %p719 = pneg %p357
        %p720 = pneg %p354
        %p721 = pneg %p378
        %p722 = pneg %p375
        %p723 = pneg %p399
        %p724 = pneg %p396
        %p725 = pneg %p420
        %p726 = pneg %p417
        %p727 = pneg %p441
        %p728 = pneg %p438
        %p729 = pneg %p462
        %p730 = pneg %p459
        %p731 = pneg %p490
        %p732 = pneg %p487
        %s733 = sand.u32 %s477, 1
        %s734 = scalar_lea.sflag [#allocation4], %s733
        %s735 = sand.u32 %s477, 1
        %s736 = smul.addr %s735, 8
        %s737 = scalar_lea.vmem [#allocation14], %s736
        %p738 = scmp.lt.s32.totalorder %s43, 1
        %s739 = scalar_select %p738, %s43, 1
        %s740 = smul.addr %s739, 8
        %s741 = scalar_lea.vmem %s0, %s740
        %p742 = scmp.lt.s32.totalorder %s43, 1
        %s743 = scalar_select %p742, %s43, 1
        %p744 = scmp.lt.s32.totalorder %s44, 0
        %s745 = scalar_select %p744, %s44, 0
        %s746 = sadd.s32 %s745, %s743
        %s747 = smul.addr %s746, 8
        %s748 = scalar_lea.vmem %s1, %s747
        %v750 = vld [vmem:[%s741] sm:$0xff]
        %v751 = vld [vmem:[%s748] sm:$0xff]
        %v752 = vld [vmem:[%s649] sm:$0x1]
        %vm753 = vcmp.gt.f32.partialorder %v752, 0.0
        %v754 = vld [vmem:[#allocation10] sm:$0x1]
        %v755 = vld [vmem:[#allocation11] sm:$0x1]
        %vm756 = vcmask 261120
        %v757 = vsel %vm756, %v750, 0.0
        %758 = vadd.xlane.f32.xlu0 %v757
        %v759 = vpop.xlane.xlu0 %758
        %v760 = vrcp.pop 32.0
        %v761 = vmul.f32 %v759, %v760
        %v762 = vsub.f32 %v750, %v761
        %v763 = vmul.f32 %v762, %v762
        %v764 = vsel %vm756, %v763, 0.0
        %765 = vadd.xlane.f32.xlu0 %v764
        %v766 = vpop.xlane.xlu0 %765
        %v767 = vmul.f32 %v766, %v760
        %v768 = vadd.f32 %v767, 1e-06
        %v769 = vrsqrt.pop %v768
        %v770 = vmul.f32 %v762, %v769
        %v772 = vlaneseq
        %v773 = vshrl.u32 %v772, 7
        %v774 = vsub.s32 0, %v773
        %v775 = vrot.slane %v754, %v774
        %v777 = vmul.f32 %v770, %v775
        %v779 = vlaneseq
        %v780 = vshrl.u32 %v779, 7
        %v781 = vsub.s32 0, %v780
        %v782 = vrot.slane %v755, %v781
        %v784 = vadd.f32 %v777, %v782
        %v785 = vsel %vm756, %v751, 0.0
        %786 = vadd.xlane.f32.xlu0 %v785
        %v787 = vpop.xlane.xlu0 %786
        %v788 = vmul.f32 %v787, %v760
        %v789 = vsub.f32 %v751, %v788
        %v790 = vmul.f32 %v789, %v789
        %v791 = vsel %vm756, %v790, 0.0
        %792 = vadd.xlane.f32.xlu0 %v791
        %v793 = vpop.xlane.xlu0 %792
        %v794 = vmul.f32 %v793, %v760
        %v795 = vadd.f32 %v794, 1e-06
        %v796 = vrsqrt.pop %v795
        %v797 = vmul.f32 %v789, %v796
        %v798 = vmul.f32 %v797, %v775
        %v799 = vadd.f32 %v798, %v782
        %v800 = vpack.c.bf16 %v799, %v799
        %v801 = vld [vmem:[%s3] sm:$0xf]
        %v802 = vld [vmem:[%s3 + $0x4] sm:$0xf]
        %v803 = vld [vmem:[%s3 + $0x8] sm:$0xf]
        %v804 = vld [vmem:[%s3 + $0xc] sm:$0xf]
        %v805 = vld [vmem:[%s4] sm:$0x1]
        %v807 = vlaneseq
        %v808 = vshrl.u32 %v807, 7
        %v809 = vsub.s32 0, %v808
        %v810 = vrot.slane %v805, %v809
        %v816 = vunpack.c.l.b16 %v801
        %v817 = vunpack.c.l.b16 %v802
        %v818 = vunpack.c.l.b16 %v803
        %v819 = vunpack.c.l.b16 %v804
        %v820 = vpack.c.b16 %v817, %v816
        %v821 = vpack.c.b16 %v819, %v818
        %v825 = vsel %vm756, %v800, 0
        %827 = vmatprep.subr.bf16.mxu0 0
        %828 = vmatpush1.bf16.msra.mxu0 %v820
        %829 = vmatprep.subr.bf16.mxu0 0
        %830 = vmatpush1.bf16.msra.mxu0 %v821
        %831 = vmatprep.subr.bf16.mxu0 0
        %832 = vmatpush1.bf16.msra.mxu0 0
        %833 = vmatprep.subr.bf16.mxu0 0
        %834 = vmatpush1.bf16.msra.mxu0 0
        %835 = vmatprep.subr.bf16.mxu0 0
        %836 = vmatpush1.bf16.msra.mxu0 0
        %837 = vmatprep.subr.bf16.mxu0 0
        %838 = vmatpush1.bf16.msra.mxu0 0
        %839 = vmatprep.subr.bf16.mxu0 0
        %840 = vmatpush1.bf16.msra.mxu0 0
        %841 = vmatprep.subr.bf16.mxu0 0
        %842 = vmatpush1.bf16.msra.mxu0 0
        %843 = vmatprep.subr.bf16.mxu0 0
        %844 = vmatpush1.bf16.msra.mxu0 0
        %845 = vmatprep.subr.bf16.mxu0 0
        %846 = vmatpush1.bf16.msra.mxu0 0
        %847 = vmatprep.subr.bf16.mxu0 0
        %848 = vmatpush1.bf16.msra.mxu0 0
        %849 = vmatprep.subr.bf16.mxu0 0
        %850 = vmatpush1.bf16.msra.mxu0 0
        %851 = vmatprep.subr.bf16.mxu0 0
        %852 = vmatpush1.bf16.msra.mxu0 0
        %853 = vmatprep.subr.bf16.mxu0 0
        %854 = vmatpush1.bf16.msra.mxu0 0
        %855 = vmatprep.subr.bf16.mxu0 0
        %856 = vmatpush1.bf16.msra.mxu0 0
        %857 = vmatprep.subr.bf16.mxu0 0
        %858 = vmatpush1.bf16.msra.mxu0 0
        %859 = vmatprep.mubr.bf16.mxu0 0
        %860 = vmatmul.mubr.bf16.gmra.mrb[0].mxu0 %v825
        %v861 = vpop.f32.mrb[0].mxu0
        %v862 = vadd.f32 %v810, %v861
        %v863 = vpop.f32.mrb[0].mxu0
        %v864 = vpop.f32.mrb[0].mxu0
        %v865 = vpop.f32.mrb[0].mxu0
        %866 = vdwg.mxu0
        %v867 = vpack.c.bf16 %v784, %v784
        %v868 = vld [vmem:[%s5] sm:$0xf]
        %v869 = vld [vmem:[%s5 + $0x4] sm:$0xf]
        %v870 = vld [vmem:[%s5 + $0x8] sm:$0xf]
        %v871 = vld [vmem:[%s5 + $0xc] sm:$0xf]
        %v872 = vld [vmem:[#allocation5] sm:$0x1]
        %v874 = vlaneseq
        %v875 = vshrl.u32 %v874, 7
        %v876 = vsub.s32 0, %v875
        %v877 = vrot.slane %v872, %v876
        %v883 = vunpack.c.l.b16 %v868
        %v884 = vunpack.c.l.b16 %v869
        %v885 = vunpack.c.l.b16 %v870
        %v886 = vunpack.c.l.b16 %v871
        %v887 = vpack.c.b16 %v884, %v883
        %v888 = vpack.c.b16 %v886, %v885
        %v892 = vsel %vm756, %v867, 0
        %894 = vmatprep.subr.bf16.mxu0 0
        %895 = vmatpush1.bf16.msra.mxu0 %v887
        %896 = vmatprep.subr.bf16.mxu0 0
        %897 = vmatpush1.bf16.msra.mxu0 %v888
        %898 = vmatprep.subr.bf16.mxu0 0
        %899 = vmatpush1.bf16.msra.mxu0 0
        %900 = vmatprep.subr.bf16.mxu0 0
        %901 = vmatpush1.bf16.msra.mxu0 0
        %902 = vmatprep.subr.bf16.mxu0 0
        %903 = vmatpush1.bf16.msra.mxu0 0
        %904 = vmatprep.subr.bf16.mxu0 0
        %905 = vmatpush1.bf16.msra.mxu0 0
        %906 = vmatprep.subr.bf16.mxu0 0
        %907 = vmatpush1.bf16.msra.mxu0 0
        %908 = vmatprep.subr.bf16.mxu0 0
        %909 = vmatpush1.bf16.msra.mxu0 0
        %910 = vmatprep.subr.bf16.mxu0 0
        %911 = vmatpush1.bf16.msra.mxu0 0
        %912 = vmatprep.subr.bf16.mxu0 0
        %913 = vmatpush1.bf16.msra.mxu0 0
        %914 = vmatprep.subr.bf16.mxu0 0
        %915 = vmatpush1.bf16.msra.mxu0 0
        %916 = vmatprep.subr.bf16.mxu0 0
        %917 = vmatpush1.bf16.msra.mxu0 0
        %918 = vmatprep.subr.bf16.mxu0 0
        %919 = vmatpush1.bf16.msra.mxu0 0
        %920 = vmatprep.subr.bf16.mxu0 0
        %921 = vmatpush1.bf16.msra.mxu0 0
        %922 = vmatprep.subr.bf16.mxu0 0
        %923 = vmatpush1.bf16.msra.mxu0 0
        %924 = vmatprep.subr.bf16.mxu0 0
        %925 = vmatpush1.bf16.msra.mxu0 0
        %926 = vmatprep.mubr.bf16.mxu0 0
        %927 = vmatmul.mubr.bf16.gmra.mrb[0].mxu0 %v892
        %v928 = vpop.f32.mrb[0].mxu0
        %v929 = vadd.f32 %v877, %v928
        %v930 = vpop.f32.mrb[0].mxu0
        %v931 = vpop.f32.mrb[0].mxu0
        %v932 = vpop.f32.mrb[0].mxu0
        %933 = vdwg.mxu0
        %v934 = vld [vmem:[%s7] sm:$0xf]
        %v935 = vld [vmem:[%s7 + $0x4] sm:$0xf]
        %v936 = vld [vmem:[%s7 + $0x8] sm:$0xf]
        %v937 = vld [vmem:[%s7 + $0xc] sm:$0xf]
        %v938 = vld [vmem:[#allocation7] sm:$0x1]
        %v940 = vlaneseq
        %v941 = vshrl.u32 %v940, 7
        %v942 = vsub.s32 0, %v941
        %v943 = vrot.slane %v938, %v942
        %v949 = vunpack.c.l.b16 %v934
        %v950 = vunpack.c.l.b16 %v935
        %v951 = vunpack.c.l.b16 %v936
        %v952 = vunpack.c.l.b16 %v937
        %v953 = vpack.c.b16 %v950, %v949
        %v954 = vpack.c.b16 %v952, %v951
        %957 = vmatprep.subr.bf16.mxu0 0
        %958 = vmatpush1.bf16.msra.mxu0 %v953
        %959 = vmatprep.subr.bf16.mxu0 0
        %960 = vmatpush1.bf16.msra.mxu0 %v954
        %961 = vmatprep.subr.bf16.mxu0 0
        %962 = vmatpush1.bf16.msra.mxu0 0
        %963 = vmatprep.subr.bf16.mxu0 0
        %964 = vmatpush1.bf16.msra.mxu0 0
        %965 = vmatprep.subr.bf16.mxu0 0
        %966 = vmatpush1.bf16.msra.mxu0 0
        %967 = vmatprep.subr.bf16.mxu0 0
        %968 = vmatpush1.bf16.msra.mxu0 0
        %969 = vmatprep.subr.bf16.mxu0 0
        %970 = vmatpush1.bf16.msra.mxu0 0
        %971 = vmatprep.subr.bf16.mxu0 0
        %972 = vmatpush1.bf16.msra.mxu0 0
        %973 = vmatprep.subr.bf16.mxu0 0
        %974 = vmatpush1.bf16.msra.mxu0 0
        %975 = vmatprep.subr.bf16.mxu0 0
        %976 = vmatpush1.bf16.msra.mxu0 0
        %977 = vmatprep.subr.bf16.mxu0 0
        %978 = vmatpush1.bf16.msra.mxu0 0
        %979 = vmatprep.subr.bf16.mxu0 0
        %980 = vmatpush1.bf16.msra.mxu0 0
        %981 = vmatprep.subr.bf16.mxu0 0
        %982 = vmatpush1.bf16.msra.mxu0 0
        %983 = vmatprep.subr.bf16.mxu0 0
        %984 = vmatpush1.bf16.msra.mxu0 0
        %985 = vmatprep.subr.bf16.mxu0 0
        %986 = vmatpush1.bf16.msra.mxu0 0
        %987 = vmatprep.subr.bf16.mxu0 0
        %988 = vmatpush1.bf16.msra.mxu0 0
        %989 = vmatprep.mubr.bf16.mxu0 0
        %990 = vmatmul.mubr.bf16.gmra.mrb[0].mxu0 %v892
        %v991 = vpop.f32.mrb[0].mxu0
        %v992 = vadd.f32 %v943, %v991
        %v993 = vpop.f32.mrb[0].mxu0
        %v994 = vpop.f32.mrb[0].mxu0
        %v995 = vpop.f32.mrb[0].mxu0
        %996 = vdwg.mxu0
        %998 = vrot.lane.b32.xlu0 %v862, 120
        %v999 = vpop.permute.xlu0 %998
        %1001 = vrot.lane.b32.xlu0 %v862, 112
        %v1002 = vpop.permute.xlu0 %1001
        %1004 = vrot.lane.b32.xlu0 %v862, 104
        %v1005 = vpop.permute.xlu0 %1004
        %v1007 = vpack.c.bf16 %v862, %v862
        %v1008 = vpack.c.bf16 %v999, %v999
        %v1009 = vpack.c.bf16 %v1002, %v1002
        %v1010 = vpack.c.bf16 %v1005, %v1005
        %1012 = vrot.lane.b32.xlu0 %v929, 120
        %v1013 = vpop.permute.xlu0 %1012
        %1015 = vrot.lane.b32.xlu0 %v929, 112
        %v1016 = vpop.permute.xlu0 %1015
        %1018 = vrot.lane.b32.xlu0 %v929, 104
        %v1019 = vpop.permute.xlu0 %1018
        %v1021 = vpack.c.bf16 %v929, %v929
        %v1022 = vpack.c.bf16 %v1013, %v1013
        %v1023 = vpack.c.bf16 %v1016, %v1016
        %v1024 = vpack.c.bf16 %v1019, %v1019
        %1026 = vrot.lane.b32.xlu0 %v992, 120
        %v1027 = vpop.permute.xlu0 %1026
        %1029 = vrot.lane.b32.xlu0 %v992, 112
        %v1030 = vpop.permute.xlu0 %1029
        %1032 = vrot.lane.b32.xlu0 %v992, 104
        %v1033 = vpop.permute.xlu0 %1032
        %v1035 = vpack.c.bf16 %v992, %v992
        %v1036 = vpack.c.bf16 %v1027, %v1027
        %v1037 = vpack.c.bf16 %v1030, %v1030
        %v1038 = vpack.c.bf16 %v1033, %v1033
        %vm1039 = vcmask 64512
        %v1041 = vsel %vm1039, %v1007, 0
        %v1044 = vsel %vm1039, %v1021, 0
        %1046 = vmatprep.subr.bf16.mxu0 0
        %1047 = vmatpush1.bf16.xpose.msra.mxu0 %v1044
        %1048 = vmatprep.subr.bf16.mxu0 0
        %1049 = vmatpush1.bf16.xpose.msra.mxu0 0
        %1050 = vmatprep.subr.bf16.mxu0 0
        %1051 = vmatpush1.bf16.xpose.msra.mxu0 0
        %1052 = vmatprep.subr.bf16.mxu0 0
        %1053 = vmatpush1.bf16.xpose.msra.mxu0 0
        %1054 = vmatprep.subr.bf16.mxu0 0
        %1055 = vmatpush1.bf16.xpose.msra.mxu0 0
        %1056 = vmatprep.subr.bf16.mxu0 0
        %1057 = vmatpush1.bf16.xpose.msra.mxu0 0
        %1058 = vmatprep.subr.bf16.mxu0 0
        %1059 = vmatpush1.bf16.xpose.msra.mxu0 0
        %1060 = vmatprep.subr.bf16.mxu0 0
        %1061 = vmatpush1.bf16.xpose.msra.mxu0 0
        %1062 = vmatprep.subr.bf16.mxu0 0
        %1063 = vmatpush1.bf16.xpose.msra.mxu0 0
        %1064 = vmatprep.subr.bf16.mxu0 0
        %1065 = vmatpush1.bf16.xpose.msra.mxu0 0
        %1066 = vmatprep.subr.bf16.mxu0 0
        %1067 = vmatpush1.bf16.xpose.msra.mxu0 0
        %1068 = vmatprep.subr.bf16.mxu0 0
        %1069 = vmatpush1.bf16.xpose.msra.mxu0 0
        %1070 = vmatprep.subr.bf16.mxu0 0
        %1071 = vmatpush1.bf16.xpose.msra.mxu0 0
        %1072 = vmatprep.subr.bf16.mxu0 0
        %1073 = vmatpush1.bf16.xpose.msra.mxu0 0
        %1074 = vmatprep.subr.bf16.mxu0 0
        %1075 = vmatpush1.bf16.xpose.msra.mxu0 0
        %1076 = vmatprep.subr.bf16.mxu0 0
        %1077 = vmatpush1.bf16.xpose.msra.mxu0 0
        %1078 = vmatprep.mubr.bf16.mxu0 0
        %1079 = vmatmul.mubr.bf16.gmra.mrb[0].mxu0 %v1041
        %v1080 = vpop.f32.mrb[0].mxu0
        %v1081 = vadd.f32 0.0, %v1080
        %v1082 = vpop.f32.mrb[0].mxu0
        %v1083 = vpop.f32.mrb[0].mxu0
        %v1084 = vpop.f32.mrb[0].mxu0
        %1085 = vdwg.mxu0
        %v1087 = vsel %vm1039, %v1008, 0
        %v1090 = vsel %vm1039, %v1022, 0
        %1092 = vmatprep.subr.bf16.mxu0 0
        %1093 = vmatpush1.bf16.xpose.msra.mxu0 %v1090
        %1094 = vmatprep.subr.bf16.mxu0 0
        %1095 = vmatpush1.bf16.xpose.msra.mxu0 0
        %1096 = vmatprep.subr.bf16.mxu0 0
        %1097 = vmatpush1.bf16.xpose.msra.mxu0 0
        %1098 = vmatprep.subr.bf16.mxu0 0
        %1099 = vmatpush1.bf16.xpose.msra.mxu0 0
        %1100 = vmatprep.subr.bf16.mxu0 0
        %1101 = vmatpush1.bf16.xpose.msra.mxu0 0
        %1102 = vmatprep.subr.bf16.mxu0 0
        %1103 = vmatpush1.bf16.xpose.msra.mxu0 0
        %1104 = vmatprep.subr.bf16.mxu0 0
        %1105 = vmatpush1.bf16.xpose.msra.mxu0 0
        %1106 = vmatprep.subr.bf16.mxu0 0
        %1107 = vmatpush1.bf16.xpose.msra.mxu0 0
        %1108 = vmatprep.subr.bf16.mxu0 0
        %1109 = vmatpush1.bf16.xpose.msra.mxu0 0
        %1110 = vmatprep.subr.bf16.mxu0 0
        %1111 = vmatpush1.bf16.xpose.msra.mxu0 0
        %1112 = vmatprep.subr.bf16.mxu0 0
        %1113 = vmatpush1.bf16.xpose.msra.mxu0 0
        %1114 = vmatprep.subr.bf16.mxu0 0
        %1115 = vmatpush1.bf16.xpose.msra.mxu0 0
        %1116 = vmatprep.subr.bf16.mxu0 0
        %1117 = vmatpush1.bf16.xpose.msra.mxu0 0
        %1118 = vmatprep.subr.bf16.mxu0 0
        %1119 = vmatpush1.bf16.xpose.msra.mxu0 0
        %1120 = vmatprep.subr.bf16.mxu0 0
        %1121 = vmatpush1.bf16.xpose.msra.mxu0 0
        %1122 = vmatprep.subr.bf16.mxu0 0
        %1123 = vmatpush1.bf16.xpose.msra.mxu0 0
        %1124 = vmatprep.mubr.bf16.mxu0 0
        %1125 = vmatmul.mubr.bf16.gmra.mrb[0].mxu0 %v1087
        %v1126 = vpop.f32.mrb[0].mxu0
        %v1127 = vadd.f32 0.0, %v1126
        %v1128 = vpop.f32.mrb[0].mxu0
        %v1129 = vpop.f32.mrb[0].mxu0
        %v1130 = vpop.f32.mrb[0].mxu0
        %1131 = vdwg.mxu0
        %v1133 = vsel %vm1039, %v1009, 0
        %v1136 = vsel %vm1039, %v1023, 0
        %1138 = vmatprep.subr.bf16.mxu0 0
        %1139 = vmatpush1.bf16.xpose.msra.mxu0 %v1136
        %1140 = vmatprep.subr.bf16.mxu0 0
        %1141 = vmatpush1.bf16.xpose.msra.mxu0 0
        %1142 = vmatprep.subr.bf16.mxu0 0
        %1143 = vmatpush1.bf16.xpose.msra.mxu0 0
        %1144 = vmatprep.subr.bf16.mxu0 0
        %1145 = vmatpush1.bf16.xpose.msra.mxu0 0
        %1146 = vmatprep.subr.bf16.mxu0 0
        %1147 = vmatpush1.bf16.xpose.msra.mxu0 0
        %1148 = vmatprep.subr.bf16.mxu0 0
        %1149 = vmatpush1.bf16.xpose.msra.mxu0 0
        %1150 = vmatprep.subr.bf16.mxu0 0
        %1151 = vmatpush1.bf16.xpose.msra.mxu0 0
        %1152 = vmatprep.subr.bf16.mxu0 0
        %1153 = vmatpush1.bf16.xpose.msra.mxu0 0
        %1154 = vmatprep.subr.bf16.mxu0 0
        %1155 = vmatpush1.bf16.xpose.msra.mxu0 0
        %1156 = vmatprep.subr.bf16.mxu0 0
        %1157 = vmatpush1.bf16.xpose.msra.mxu0 0
        %1158 = vmatprep.subr.bf16.mxu0 0
        %1159 = vmatpush1.bf16.xpose.msra.mxu0 0
        %1160 = vmatprep.subr.bf16.mxu0 0
        %1161 = vmatpush1.bf16.xpose.msra.mxu0 0
        %1162 = vmatprep.subr.bf16.mxu0 0
        %1163 = vmatpush1.bf16.xpose.msra.mxu0 0
        %1164 = vmatprep.subr.bf16.mxu0 0
        %1165 = vmatpush1.bf16.xpose.msra.mxu0 0
        %1166 = vmatprep.subr.bf16.mxu0 0
        %1167 = vmatpush1.bf16.xpose.msra.mxu0 0
        %1168 = vmatprep.subr.bf16.mxu0 0
        %1169 = vmatpush1.bf16.xpose.msra.mxu0 0
        %1170 = vmatprep.mubr.bf16.mxu0 0
        %1171 = vmatmul.mubr.bf16.gmra.mrb[0].mxu0 %v1133
        %v1172 = vpop.f32.mrb[0].mxu0
        %v1173 = vadd.f32 0.0, %v1172
        %v1174 = vpop.f32.mrb[0].mxu0
        %v1175 = vpop.f32.mrb[0].mxu0
        %v1176 = vpop.f32.mrb[0].mxu0
        %1177 = vdwg.mxu0
        %v1179 = vsel %vm1039, %v1010, 0
        %v1182 = vsel %vm1039, %v1024, 0
        %1184 = vmatprep.subr.bf16.mxu0 0
        %1185 = vmatpush1.bf16.xpose.msra.mxu0 %v1182
        %1186 = vmatprep.subr.bf16.mxu0 0
        %1187 = vmatpush1.bf16.xpose.msra.mxu0 0
        %1188 = vmatprep.subr.bf16.mxu0 0
        %1189 = vmatpush1.bf16.xpose.msra.mxu0 0
        %1190 = vmatprep.subr.bf16.mxu0 0
        %1191 = vmatpush1.bf16.xpose.msra.mxu0 0
        %1192 = vmatprep.subr.bf16.mxu0 0
        %1193 = vmatpush1.bf16.xpose.msra.mxu0 0
        %1194 = vmatprep.subr.bf16.mxu0 0
        %1195 = vmatpush1.bf16.xpose.msra.mxu0 0
        %1196 = vmatprep.subr.bf16.mxu0 0
        %1197 = vmatpush1.bf16.xpose.msra.mxu0 0
        %1198 = vmatprep.subr.bf16.mxu0 0
        %1199 = vmatpush1.bf16.xpose.msra.mxu0 0
        %1200 = vmatprep.subr.bf16.mxu0 0
        %1201 = vmatpush1.bf16.xpose.msra.mxu0 0
        %1202 = vmatprep.subr.bf16.mxu0 0
        %1203 = vmatpush1.bf16.xpose.msra.mxu0 0
        %1204 = vmatprep.subr.bf16.mxu0 0
        %1205 = vmatpush1.bf16.xpose.msra.mxu0 0
        %1206 = vmatprep.subr.bf16.mxu0 0
        %1207 = vmatpush1.bf16.xpose.msra.mxu0 0
        %1208 = vmatprep.subr.bf16.mxu0 0
        %1209 = vmatpush1.bf16.xpose.msra.mxu0 0
        %1210 = vmatprep.subr.bf16.mxu0 0
        %1211 = vmatpush1.bf16.xpose.msra.mxu0 0
        %1212 = vmatprep.subr.bf16.mxu0 0
        %1213 = vmatpush1.bf16.xpose.msra.mxu0 0
        %1214 = vmatprep.subr.bf16.mxu0 0
        %1215 = vmatpush1.bf16.xpose.msra.mxu0 0
        %1216 = vmatprep.mubr.bf16.mxu0 0
        %1217 = vmatmul.mubr.bf16.gmra.mrb[0].mxu0 %v1179
        %v1218 = vpop.f32.mrb[0].mxu0
        %v1219 = vadd.f32 0.0, %v1218
        %v1220 = vpop.f32.mrb[0].mxu0
        %v1221 = vpop.f32.mrb[0].mxu0
        %v1222 = vpop.f32.mrb[0].mxu0
        %1223 = vdwg.mxu0
        %v1224 = vmul.f32 %v1081, 0.35355338
        %v1225 = vmul.f32 %v1127, 0.35355338
        %v1226 = vmul.f32 %v1173, 0.35355338
        %v1227 = vmul.f32 %v1219, 0.35355338
        %v1228 = vsel %vm753, 1, 0
        %v1229 = vlaneseq
        %v1230 = vshrl.u32 %v1229, 7
        %v1231 = vsub.s32 0, %v1230
        %v1232 = vrot.slane %v1228, %v1231
        %vm1233 = vcmp.eq.s32.totalorder %v1232, 1
        %v1234 = vsel %vm1233, %v1224, -1e+09
        %v1235 = vsel %vm1233, %v1225, -1e+09
        %v1236 = vsel %vm1233, %v1226, -1e+09
        %v1237 = vsel %vm1233, %v1227, -1e+09
        %v1238 = vsel %vm1039, %v1234, -inf
        %1239 = vmax.xlane.f32.xlu0 %v1238
        %v1240 = vpop.xlane.xlu0 %1239
        %v1241 = vsel %vm1039, %v1235, -inf
        %1242 = vmax.xlane.f32.xlu0 %v1241
        %v1243 = vpop.xlane.xlu0 %1242
        %v1244 = vsel %vm1039, %v1236, -inf
        %1245 = vmax.xlane.f32.xlu0 %v1244
        %v1246 = vpop.xlane.xlu0 %1245
        %v1247 = vsel %vm1039, %v1237, -inf
        %1248 = vmax.xlane.f32.xlu0 %v1247
        %v1249 = vpop.xlane.xlu0 %1248
        %v1250 = vsub.f32 %v1234, %v1240
        %v1251 = vsub.f32 %v1235, %v1243
        %v1252 = vsub.f32 %v1236, %v1246
        %v1253 = vsub.f32 %v1237, %v1249
        %v1254 = vmul.f32 %v1250, 1.442695
        %v1255 = vpow.pop %v1254
        %v1256 = vmul.f32 %v1251, 1.442695
        %v1257 = vpow.pop %v1256
        %v1258 = vmul.f32 %v1252, 1.442695
        %v1259 = vpow.pop %v1258
        %v1260 = vmul.f32 %v1253, 1.442695
        %v1261 = vpow.pop %v1260
        %v1262 = vsel %vm1039, %v1255, 0.0
        %1263 = vadd.xlane.f32.xlu0 %v1262
        %v1264 = vpop.xlane.xlu0 %1263
        %v1265 = vsel %vm1039, %v1257, 0.0
        %1266 = vadd.xlane.f32.xlu0 %v1265
        %v1267 = vpop.xlane.xlu0 %1266
        %v1268 = vsel %vm1039, %v1259, 0.0
        %1269 = vadd.xlane.f32.xlu0 %v1268
        %v1270 = vpop.xlane.xlu0 %1269
        %v1271 = vsel %vm1039, %v1261, 0.0
        %1272 = vadd.xlane.f32.xlu0 %v1271
        %v1273 = vpop.xlane.xlu0 %1272
        %v1274 = vrcp.pop %v1264
        %v1275 = vrcp.pop %v1267
        %v1276 = vrcp.pop %v1270
        %v1277 = vrcp.pop %v1273
        %v1278 = vmul.f32 %v1255, %v1274
        %v1279 = vmul.f32 %v1257, %v1275
        %v1280 = vmul.f32 %v1259, %v1276
        %v1281 = vmul.f32 %v1261, %v1277
        %v1282 = vpack.c.bf16 %v1278, %v1278
        %v1283 = vpack.c.bf16 %v1279, %v1279
        %v1284 = vpack.c.bf16 %v1280, %v1280
        %v1285 = vpack.c.bf16 %v1281, %v1281
        %v1287 = vsel %vm1039, %v1282, 0
        %vm1289 = vcmask 1043456
        %v1291 = vsel %vm1289, %v1035, 0
        %1293 = vmatprep.subr.bf16.mxu0 0
        %1294 = vmatpush1.bf16.msra.mxu0 %v1291
        %1295 = vmatprep.subr.bf16.mxu0 0
        %1296 = vmatpush1.bf16.msra.mxu0 0
        %1297 = vmatprep.subr.bf16.mxu0 0
        %1298 = vmatpush1.bf16.msra.mxu0 0
        %1299 = vmatprep.subr.bf16.mxu0 0
        %1300 = vmatpush1.bf16.msra.mxu0 0
        %1301 = vmatprep.subr.bf16.mxu0 0
        %1302 = vmatpush1.bf16.msra.mxu0 0
        %1303 = vmatprep.subr.bf16.mxu0 0
        %1304 = vmatpush1.bf16.msra.mxu0 0
        %1305 = vmatprep.subr.bf16.mxu0 0
        %1306 = vmatpush1.bf16.msra.mxu0 0
        %1307 = vmatprep.subr.bf16.mxu0 0
        %1308 = vmatpush1.bf16.msra.mxu0 0
        %1309 = vmatprep.subr.bf16.mxu0 0
        %1310 = vmatpush1.bf16.msra.mxu0 0
        %1311 = vmatprep.subr.bf16.mxu0 0
        %1312 = vmatpush1.bf16.msra.mxu0 0
        %1313 = vmatprep.subr.bf16.mxu0 0
        %1314 = vmatpush1.bf16.msra.mxu0 0
        %1315 = vmatprep.subr.bf16.mxu0 0
        %1316 = vmatpush1.bf16.msra.mxu0 0
        %1317 = vmatprep.subr.bf16.mxu0 0
        %1318 = vmatpush1.bf16.msra.mxu0 0
        %1319 = vmatprep.subr.bf16.mxu0 0
        %1320 = vmatpush1.bf16.msra.mxu0 0
        %1321 = vmatprep.subr.bf16.mxu0 0
        %1322 = vmatpush1.bf16.msra.mxu0 0
        %1323 = vmatprep.subr.bf16.mxu0 0
        %1324 = vmatpush1.bf16.msra.mxu0 0
        %1325 = vmatprep.mubr.bf16.mxu0 0
        %1326 = vmatmul.mubr.bf16.gmra.mrb[0].mxu0 %v1287
        %v1327 = vpop.f32.mrb[0].mxu0
        %v1328 = vadd.f32 0.0, %v1327
        %v1329 = vpop.f32.mrb[0].mxu0
        %v1330 = vpop.f32.mrb[0].mxu0
        %v1331 = vpop.f32.mrb[0].mxu0
        %1332 = vdwg.mxu0
        %v1334 = vsel %vm1039, %v1283, 0
        %v1337 = vsel %vm1289, %v1036, 0
        %1339 = vmatprep.subr.bf16.mxu0 0
        %1340 = vmatpush1.bf16.msra.mxu0 %v1337
        %1341 = vmatprep.subr.bf16.mxu0 0
        %1342 = vmatpush1.bf16.msra.mxu0 0
        %1343 = vmatprep.subr.bf16.mxu0 0
        %1344 = vmatpush1.bf16.msra.mxu0 0
        %1345 = vmatprep.subr.bf16.mxu0 0
        %1346 = vmatpush1.bf16.msra.mxu0 0
        %1347 = vmatprep.subr.bf16.mxu0 0
        %1348 = vmatpush1.bf16.msra.mxu0 0
        %1349 = vmatprep.subr.bf16.mxu0 0
        %1350 = vmatpush1.bf16.msra.mxu0 0
        %1351 = vmatprep.subr.bf16.mxu0 0
        %1352 = vmatpush1.bf16.msra.mxu0 0
        %1353 = vmatprep.subr.bf16.mxu0 0
        %1354 = vmatpush1.bf16.msra.mxu0 0
        %1355 = vmatprep.subr.bf16.mxu0 0
        %1356 = vmatpush1.bf16.msra.mxu0 0
        %1357 = vmatprep.subr.bf16.mxu0 0
        %1358 = vmatpush1.bf16.msra.mxu0 0
        %1359 = vmatprep.subr.bf16.mxu0 0
        %1360 = vmatpush1.bf16.msra.mxu0 0
        %1361 = vmatprep.subr.bf16.mxu0 0
        %1362 = vmatpush1.bf16.msra.mxu0 0
        %1363 = vmatprep.subr.bf16.mxu0 0
        %1364 = vmatpush1.bf16.msra.mxu0 0
        %1365 = vmatprep.subr.bf16.mxu0 0
        %1366 = vmatpush1.bf16.msra.mxu0 0
        %1367 = vmatprep.subr.bf16.mxu0 0
        %1368 = vmatpush1.bf16.msra.mxu0 0
        %1369 = vmatprep.subr.bf16.mxu0 0
        %1370 = vmatpush1.bf16.msra.mxu0 0
        %1371 = vmatprep.mubr.bf16.mxu0 0
        %1372 = vmatmul.mubr.bf16.gmra.mrb[0].mxu0 %v1334
        %v1373 = vpop.f32.mrb[0].mxu0
        %v1374 = vadd.f32 0.0, %v1373
        %v1375 = vpop.f32.mrb[0].mxu0
        %v1376 = vpop.f32.mrb[0].mxu0
        %v1377 = vpop.f32.mrb[0].mxu0
        %1378 = vdwg.mxu0
        %v1380 = vsel %vm1039, %v1284, 0
        %v1383 = vsel %vm1289, %v1037, 0
        %1385 = vmatprep.subr.bf16.mxu0 0
        %1386 = vmatpush1.bf16.msra.mxu0 %v1383
        %1387 = vmatprep.subr.bf16.mxu0 0
        %1388 = vmatpush1.bf16.msra.mxu0 0
        %1389 = vmatprep.subr.bf16.mxu0 0
        %1390 = vmatpush1.bf16.msra.mxu0 0
        %1391 = vmatprep.subr.bf16.mxu0 0
        %1392 = vmatpush1.bf16.msra.mxu0 0
        %1393 = vmatprep.subr.bf16.mxu0 0
        %1394 = vmatpush1.bf16.msra.mxu0 0
        %1395 = vmatprep.subr.bf16.mxu0 0
        %1396 = vmatpush1.bf16.msra.mxu0 0
        %1397 = vmatprep.subr.bf16.mxu0 0
        %1398 = vmatpush1.bf16.msra.mxu0 0
        %1399 = vmatprep.subr.bf16.mxu0 0
        %1400 = vmatpush1.bf16.msra.mxu0 0
        %1401 = vmatprep.subr.bf16.mxu0 0
        %1402 = vmatpush1.bf16.msra.mxu0 0
        %1403 = vmatprep.subr.bf16.mxu0 0
        %1404 = vmatpush1.bf16.msra.mxu0 0
        %1405 = vmatprep.subr.bf16.mxu0 0
        %1406 = vmatpush1.bf16.msra.mxu0 0
        %1407 = vmatprep.subr.bf16.mxu0 0
        %1408 = vmatpush1.bf16.msra.mxu0 0
        %1409 = vmatprep.subr.bf16.mxu0 0
        %1410 = vmatpush1.bf16.msra.mxu0 0
        %1411 = vmatprep.subr.bf16.mxu0 0
        %1412 = vmatpush1.bf16.msra.mxu0 0
        %1413 = vmatprep.subr.bf16.mxu0 0
        %1414 = vmatpush1.bf16.msra.mxu0 0
        %1415 = vmatprep.subr.bf16.mxu0 0
        %1416 = vmatpush1.bf16.msra.mxu0 0
        %1417 = vmatprep.mubr.bf16.mxu0 0
        %1418 = vmatmul.mubr.bf16.gmra.mrb[0].mxu0 %v1380
        %v1419 = vpop.f32.mrb[0].mxu0
        %v1420 = vadd.f32 0.0, %v1419
        %v1421 = vpop.f32.mrb[0].mxu0
        %v1422 = vpop.f32.mrb[0].mxu0
        %v1423 = vpop.f32.mrb[0].mxu0
        %1424 = vdwg.mxu0
        %v1426 = vsel %vm1039, %v1285, 0
        %v1429 = vsel %vm1289, %v1038, 0
        %1431 = vmatprep.subr.bf16.mxu0 0
        %1432 = vmatpush1.bf16.msra.mxu0 %v1429
        %1433 = vmatprep.subr.bf16.mxu0 0
        %1434 = vmatpush1.bf16.msra.mxu0 0
        %1435 = vmatprep.subr.bf16.mxu0 0
        %1436 = vmatpush1.bf16.msra.mxu0 0
        %1437 = vmatprep.subr.bf16.mxu0 0
        %1438 = vmatpush1.bf16.msra.mxu0 0
        %1439 = vmatprep.subr.bf16.mxu0 0
        %1440 = vmatpush1.bf16.msra.mxu0 0
        %1441 = vmatprep.subr.bf16.mxu0 0
        %1442 = vmatpush1.bf16.msra.mxu0 0
        %1443 = vmatprep.subr.bf16.mxu0 0
        %1444 = vmatpush1.bf16.msra.mxu0 0
        %1445 = vmatprep.subr.bf16.mxu0 0
        %1446 = vmatpush1.bf16.msra.mxu0 0
        %1447 = vmatprep.subr.bf16.mxu0 0
        %1448 = vmatpush1.bf16.msra.mxu0 0
        %1449 = vmatprep.subr.bf16.mxu0 0
        %1450 = vmatpush1.bf16.msra.mxu0 0
        %1451 = vmatprep.subr.bf16.mxu0 0
        %1452 = vmatpush1.bf16.msra.mxu0 0
        %1453 = vmatprep.subr.bf16.mxu0 0
        %1454 = vmatpush1.bf16.msra.mxu0 0
        %1455 = vmatprep.subr.bf16.mxu0 0
        %1456 = vmatpush1.bf16.msra.mxu0 0
        %1457 = vmatprep.subr.bf16.mxu0 0
        %1458 = vmatpush1.bf16.msra.mxu0 0
        %1459 = vmatprep.subr.bf16.mxu0 0
        %1460 = vmatpush1.bf16.msra.mxu0 0
        %1461 = vmatprep.subr.bf16.mxu0 0
        %1462 = vmatpush1.bf16.msra.mxu0 0
        %1463 = vmatprep.mubr.bf16.mxu0 0
        %1464 = vmatmul.mubr.bf16.gmra.mrb[0].mxu0 %v1426
        %v1465 = vpop.f32.mrb[0].mxu0
        %v1466 = vadd.f32 0.0, %v1465
        %v1467 = vpop.f32.mrb[0].mxu0
        %v1468 = vpop.f32.mrb[0].mxu0
        %v1469 = vpop.f32.mrb[0].mxu0
        %1470 = vdwg.mxu0
        %1472 = vrot.lane.b32.xlu0 %v1374, 8
        %v1473 = vpop.permute.xlu0 %1472
        %1476 = vrot.lane.b32.xlu0 %v1420, 16
        %v1477 = vpop.permute.xlu0 %1476
        %1480 = vrot.lane.b32.xlu0 %v1466, 24
        %v1481 = vpop.permute.xlu0 %1480
        %v1483 = vsel %vm1039, %v1328, %v1473
        %vm1484 = vcmask 130048
        %v1485 = vsel %vm1484, %v1483, %v1477
        %vm1486 = vcmask 195584
        %v1487 = vsel %vm1486, %v1485, %v1481
        %v1488 = vpack.c.bf16 %v1487, %v1487
        %v1489 = vld [vmem:[%s9] sm:$0xf]
        %v1490 = vld [vmem:[%s9 + $0x4] sm:$0xf]
        %v1491 = vld [vmem:[%s9 + $0x8] sm:$0xf]
        %v1492 = vld [vmem:[%s9 + $0xc] sm:$0xf]
        %v1493 = vld [vmem:[#allocation8] sm:$0x1]
        %v1495 = vlaneseq
        %v1496 = vshrl.u32 %v1495, 7
        %v1497 = vsub.s32 0, %v1496
        %v1498 = vrot.slane %v1493, %v1497
        %v1504 = vunpack.c.l.b16 %v1489
        %v1505 = vunpack.c.l.b16 %v1490
        %v1506 = vunpack.c.l.b16 %v1491
        %v1507 = vunpack.c.l.b16 %v1492
        %v1508 = vpack.c.b16 %v1505, %v1504
        %v1509 = vpack.c.b16 %v1507, %v1506
        %v1513 = vsel %vm756, %v1488, 0
        %1515 = vmatprep.subr.bf16.mxu0 0
        %1516 = vmatpush1.bf16.msra.mxu0 %v1508
        %1517 = vmatprep.subr.bf16.mxu0 0
        %1518 = vmatpush1.bf16.msra.mxu0 %v1509
        %1519 = vmatprep.subr.bf16.mxu0 0
        %1520 = vmatpush1.bf16.msra.mxu0 0
        %1521 = vmatprep.subr.bf16.mxu0 0
        %1522 = vmatpush1.bf16.msra.mxu0 0
        %1523 = vmatprep.subr.bf16.mxu0 0
        %1524 = vmatpush1.bf16.msra.mxu0 0
        %1525 = vmatprep.subr.bf16.mxu0 0
        %1526 = vmatpush1.bf16.msra.mxu0 0
        %1527 = vmatprep.subr.bf16.mxu0 0
        %1528 = vmatpush1.bf16.msra.mxu0 0
        %1529 = vmatprep.subr.bf16.mxu0 0
        %1530 = vmatpush1.bf16.msra.mxu0 0
        %1531 = vmatprep.subr.bf16.mxu0 0
        %1532 = vmatpush1.bf16.msra.mxu0 0
        %1533 = vmatprep.subr.bf16.mxu0 0
        %1534 = vmatpush1.bf16.msra.mxu0 0
        %1535 = vmatprep.subr.bf16.mxu0 0
        %1536 = vmatpush1.bf16.msra.mxu0 0
        %1537 = vmatprep.subr.bf16.mxu0 0
        %1538 = vmatpush1.bf16.msra.mxu0 0
        %1539 = vmatprep.subr.bf16.mxu0 0
        %1540 = vmatpush1.bf16.msra.mxu0 0
        %1541 = vmatprep.subr.bf16.mxu0 0
        %1542 = vmatpush1.bf16.msra.mxu0 0
        %1543 = vmatprep.subr.bf16.mxu0 0
        %1544 = vmatpush1.bf16.msra.mxu0 0
        %1545 = vmatprep.subr.bf16.mxu0 0
        %1546 = vmatpush1.bf16.msra.mxu0 0
        %1547 = vmatprep.mubr.bf16.mxu0 0
        %1548 = vmatmul.mubr.bf16.gmra.mrb[0].mxu0 %v1513
        %v1549 = vpop.f32.mrb[0].mxu0
        %v1550 = vadd.f32 %v1498, %v1549
        %v1551 = vpop.f32.mrb[0].mxu0
        %v1552 = vpop.f32.mrb[0].mxu0
        %v1553 = vpop.f32.mrb[0].mxu0
        %1554 = vdwg.mxu0
        %v1555 = vadd.f32 %v751, %v1550
        %v1556 = vld [vmem:[#allocation13] sm:$0x1]
        %v1557 = vld [vmem:[%s14] sm:$0x1]
        %v1558 = vsel %vm756, %v1555, 0.0
        %1559 = vadd.xlane.f32.xlu0 %v1558
        %v1560 = vpop.xlane.xlu0 %1559
        %v1561 = vmul.f32 %v1560, %v760
        %v1562 = vsub.f32 %v1555, %v1561
        %v1563 = vmul.f32 %v1562, %v1562
        %v1564 = vsel %vm756, %v1563, 0.0
        %1565 = vadd.xlane.f32.xlu0 %v1564
        %v1566 = vpop.xlane.xlu0 %1565
        %v1567 = vmul.f32 %v1566, %v760
        %v1568 = vadd.f32 %v1567, 1e-06
        %v1569 = vrsqrt.pop %v1568
        %v1570 = vmul.f32 %v1562, %v1569
        %v1572 = vlaneseq
        %v1573 = vshrl.u32 %v1572, 7
        %v1574 = vsub.s32 0, %v1573
        %v1575 = vrot.slane %v1556, %v1574
        %v1577 = vmul.f32 %v1570, %v1575
        %v1579 = vlaneseq
        %v1580 = vshrl.u32 %v1579, 7
        %v1581 = vsub.s32 0, %v1580
        %v1582 = vrot.slane %v1557, %v1581
        %v1584 = vadd.f32 %v1577, %v1582
        %v1585 = vpack.c.bf16 %v1584, %v1584
        %v1586 = vld [vmem:[%s15] sm:$0xf]
        %v1587 = vld [vmem:[%s15 + $0x4] sm:$0xf]
        %v1588 = vld [vmem:[%s15 + $0x8] sm:$0xf]
        %v1589 = vld [vmem:[%s15 + $0xc] sm:$0xf]
        %v1590 = vld [vmem:[%s16] sm:$0x1]
        %v1592 = vlaneseq
        %v1593 = vshrl.u32 %v1592, 7
        %v1594 = vsub.s32 0, %v1593
        %v1595 = vrot.slane %v1590, %v1594
        %v1601 = vunpack.c.l.b16 %v1586
        %v1602 = vunpack.c.l.b16 %v1587
        %v1603 = vunpack.c.l.b16 %v1588
        %v1604 = vunpack.c.l.b16 %v1589
        %v1605 = vpack.c.b16 %v1602, %v1601
        %v1606 = vpack.c.b16 %v1604, %v1603
        %v1610 = vsel %vm756, %v1585, 0
        %1612 = vmatprep.subr.bf16.mxu0 0
        %1613 = vmatpush1.bf16.msra.mxu0 %v1605
        %1614 = vmatprep.subr.bf16.mxu0 0
        %1615 = vmatpush1.bf16.msra.mxu0 %v1606
        %1616 = vmatprep.subr.bf16.mxu0 0
        %1617 = vmatpush1.bf16.msra.mxu0 0
        %1618 = vmatprep.subr.bf16.mxu0 0
        %1619 = vmatpush1.bf16.msra.mxu0 0
        %1620 = vmatprep.subr.bf16.mxu0 0
        %1621 = vmatpush1.bf16.msra.mxu0 0
        %1622 = vmatprep.subr.bf16.mxu0 0
        %1623 = vmatpush1.bf16.msra.mxu0 0
        %1624 = vmatprep.subr.bf16.mxu0 0
        %1625 = vmatpush1.bf16.msra.mxu0 0
        %1626 = vmatprep.subr.bf16.mxu0 0
        %1627 = vmatpush1.bf16.msra.mxu0 0
        %1628 = vmatprep.subr.bf16.mxu0 0
        %1629 = vmatpush1.bf16.msra.mxu0 0
        %1630 = vmatprep.subr.bf16.mxu0 0
        %1631 = vmatpush1.bf16.msra.mxu0 0
        %1632 = vmatprep.subr.bf16.mxu0 0
        %1633 = vmatpush1.bf16.msra.mxu0 0
        %1634 = vmatprep.subr.bf16.mxu0 0
        %1635 = vmatpush1.bf16.msra.mxu0 0
        %1636 = vmatprep.subr.bf16.mxu0 0
        %1637 = vmatpush1.bf16.msra.mxu0 0
        %1638 = vmatprep.subr.bf16.mxu0 0
        %1639 = vmatpush1.bf16.msra.mxu0 0
        %1640 = vmatprep.subr.bf16.mxu0 0
        %1641 = vmatpush1.bf16.msra.mxu0 0
        %1642 = vmatprep.subr.bf16.mxu0 0
        %1643 = vmatpush1.bf16.msra.mxu0 0
        %1644 = vmatprep.mubr.bf16.mxu0 0
        %1645 = vmatmul.mubr.bf16.gmra.mrb[0].mxu0 %v1610
        %v1646 = vpop.f32.mrb[0].mxu0
        %v1647 = vadd.f32 %v1595, %v1646
        %v1648 = vpop.f32.mrb[0].mxu0
        %v1649 = vpop.f32.mrb[0].mxu0
        %v1650 = vpop.f32.mrb[0].mxu0
        %1651 = vdwg.mxu0
        %v1652 = vmul.f32 %v1647, %v1647
        %v1653 = vmul.f32 %v1647, %v1652
        %v1654 = vmul.f32 %v1653, 0.044715
        %v1655 = vadd.f32 %v1647, %v1654
        %v1656 = vmul.f32 %v1655, 0.7978846
        %v1657 = vtanh.pop %v1656
        %v1658 = vadd.f32 %v1657, 1.0
        %v1659 = vmul.f32 %v1658, 0.5
        %v1660 = vmul.f32 %v1647, %v1659
        %v1661 = vpack.c.bf16 %v1660, %v1660
        %v1662 = vld [vmem:[%s17] sm:$0xf]
        %v1663 = vld [vmem:[%s17 + $0x4] sm:$0xf]
        %v1664 = vld [vmem:[%s17 + $0x8] sm:$0xf]
        %v1665 = vld [vmem:[%s17 + $0xc] sm:$0xf]
        %v1666 = vld [vmem:[%s17 + $0x10] sm:$0xf]
        %v1667 = vld [vmem:[%s17 + $0x14] sm:$0xf]
        %v1668 = vld [vmem:[%s17 + $0x18] sm:$0xf]
        %v1669 = vld [vmem:[%s17 + $0x1c] sm:$0xf]
        %v1670 = vld [vmem:[%s17 + $0x20] sm:$0xf]
        %v1671 = vld [vmem:[%s17 + $0x24] sm:$0xf]
        %v1672 = vld [vmem:[%s17 + $0x28] sm:$0xf]
        %v1673 = vld [vmem:[%s17 + $0x2c] sm:$0xf]
        %v1674 = vld [vmem:[%s17 + $0x30] sm:$0xf]
        %v1675 = vld [vmem:[%s17 + $0x34] sm:$0xf]
        %v1676 = vld [vmem:[%s17 + $0x38] sm:$0xf]
        %v1677 = vld [vmem:[%s17 + $0x3c] sm:$0xf]
        %v1678 = vld [vmem:[%s18] sm:$0x1]
        %v1680 = vlaneseq
        %v1681 = vshrl.u32 %v1680, 7
        %v1682 = vsub.s32 0, %v1681
        %v1683 = vrot.slane %v1678, %v1682
        %v1701 = vunpack.c.l.b16 %v1662
        %v1702 = vunpack.c.l.b16 %v1663
        %v1703 = vunpack.c.l.b16 %v1664
        %v1704 = vunpack.c.l.b16 %v1665
        %v1705 = vunpack.c.l.b16 %v1666
        %v1706 = vunpack.c.l.b16 %v1667
        %v1707 = vunpack.c.l.b16 %v1668
        %v1708 = vunpack.c.l.b16 %v1669
        %v1709 = vunpack.c.l.b16 %v1670
        %v1710 = vunpack.c.l.b16 %v1671
        %v1711 = vunpack.c.l.b16 %v1672
        %v1712 = vunpack.c.l.b16 %v1673
        %v1713 = vunpack.c.l.b16 %v1674
        %v1714 = vunpack.c.l.b16 %v1675
        %v1715 = vunpack.c.l.b16 %v1676
        %v1716 = vunpack.c.l.b16 %v1677
        %v1717 = vpack.c.b16 %v1702, %v1701
        %v1718 = vpack.c.b16 %v1704, %v1703
        %v1719 = vpack.c.b16 %v1706, %v1705
        %v1720 = vpack.c.b16 %v1708, %v1707
        %v1721 = vpack.c.b16 %v1710, %v1709
        %v1722 = vpack.c.b16 %v1712, %v1711
        %v1723 = vpack.c.b16 %v1714, %v1713
        %v1724 = vpack.c.b16 %v1716, %v1715
        %1733 = vmatprep.subr.bf16.mxu0 0
        %1734 = vmatpush1.bf16.msra.mxu0 %v1717
        %1735 = vmatprep.subr.bf16.mxu0 0
        %1736 = vmatpush1.bf16.msra.mxu0 %v1718
        %1737 = vmatprep.subr.bf16.mxu0 0
        %1738 = vmatpush1.bf16.msra.mxu0 %v1719
        %1739 = vmatprep.subr.bf16.mxu0 0
        %1740 = vmatpush1.bf16.msra.mxu0 %v1720
        %1741 = vmatprep.subr.bf16.mxu0 0
        %1742 = vmatpush1.bf16.msra.mxu0 %v1721
        %1743 = vmatprep.subr.bf16.mxu0 0
        %1744 = vmatpush1.bf16.msra.mxu0 %v1722
        %1745 = vmatprep.subr.bf16.mxu0 0
        %1746 = vmatpush1.bf16.msra.mxu0 %v1723
        %1747 = vmatprep.subr.bf16.mxu0 0
        %1748 = vmatpush1.bf16.msra.mxu0 %v1724
        %1749 = vmatprep.subr.bf16.mxu0 0
        %1750 = vmatpush1.bf16.msra.mxu0 0
        %1751 = vmatprep.subr.bf16.mxu0 0
        %1752 = vmatpush1.bf16.msra.mxu0 0
        %1753 = vmatprep.subr.bf16.mxu0 0
        %1754 = vmatpush1.bf16.msra.mxu0 0
        %1755 = vmatprep.subr.bf16.mxu0 0
        %1756 = vmatpush1.bf16.msra.mxu0 0
        %1757 = vmatprep.subr.bf16.mxu0 0
        %1758 = vmatpush1.bf16.msra.mxu0 0
        %1759 = vmatprep.subr.bf16.mxu0 0
        %1760 = vmatpush1.bf16.msra.mxu0 0
        %1761 = vmatprep.subr.bf16.mxu0 0
        %1762 = vmatpush1.bf16.msra.mxu0 0
        %1763 = vmatprep.subr.bf16.mxu0 0
        %1764 = vmatpush1.bf16.msra.mxu0 0
        %1765 = vmatprep.mubr.bf16.mxu0 0
        %1766 = vmatmul.mubr.bf16.gmra.mrb[0].mxu0 %v1661
        %v1767 = vpop.f32.mrb[0].mxu0
        %v1768 = vadd.f32 %v1683, %v1767
        %v1769 = vpop.f32.mrb[0].mxu0
        %v1770 = vpop.f32.mrb[0].mxu0
        %v1771 = vpop.f32.mrb[0].mxu0
        %1772 = vdwg.mxu0
        %v1773 = vadd.f32 %v1555, %v1768
        %1774 = vst.msk [vmem:[%s737] sm:$0xff] %vm756, %v1773
        %s1775 = sand.u32 %s477, 1
        %s1776 = scalar_lea.sflag [#allocation4], %s1775
        %s1777 = sand.u32 %s477, 1
        %s1778 = smul.addr %s1777, 8
        %s1779 = scalar_lea.vmem [#allocation14], %s1778
        // Predicated region
        $region125: #{tpu_custom_call.1} parent=95 // pred_check
          %p1780 = pneg %p487
        $region126: #{tpu_custom_call.1} parent=95 // pred_check_branch
          %1782 = sbr.rel (%p1780) target = $region128
        $region127: #{tpu_custom_call.1} parent=95 // pred_region
          %s1784 = ssub.s32 128, 128
          %1785 = vsyncadd %s1776, %s1784
          %s1786 = sadd.s32 %s44, %s43
          %s1787 = smul.addr %s1786, 128
          %s1788 = scalar_lea.hbm %s19, %s1787
          %s1790 = sshll.u32 %s1779, 4
          %s1791 = int_to_ptr.vmem [resolvable:$true] %s1790
          %1793 = dma.vmem_to_hbm [thread:$0]  %s1791, 128, %s1788, %s1776
        $region128: #{tpu_custom_call.1} parent=95 // pred_fallthru
          _
      $region96: #{tpu_custom_call.1} parent=5 // pred_fallthru
        _
      %p1794 = scmp.le.s32.totalorder 2, %s34
      // Predicated region
      $region129: #{tpu_custom_call.1} parent=5 // pred_check
        %p1795 = pneg %p1794
      $region130: #{tpu_custom_call.1} parent=5 // pred_check_branch
        %1797 = sbr.rel (%p1795) target = $region132
      $region131: #{tpu_custom_call.1} parent=5 // pred_region
        %s1798 = ssub.s32 %s34, 2
        // Predicated region
        $region133: #{tpu_custom_call.1} parent=131 // pred_check
          %p1799 = pneg %p493
        $region134: #{tpu_custom_call.1} parent=131 // pred_check_branch
          %1801 = sbr.rel (%p1799) target = $region136
        $region135: #{tpu_custom_call.1} parent=131 // pred_region
          %s1802 = sand.u32 %s478, 1
          %s1803 = scalar_lea.sflag [#allocation4], %s1802
          %s1804 = sand.u32 %s478, 1
          %s1805 = smul.addr %s1804, 8
          %s1806 = scalar_lea.vmem [#allocation14], %s1805
          %1807 = dma.done %s1803, 128
        $region136: #{tpu_custom_call.1} parent=131 // pred_fallthru
          _
      $region132: #{tpu_custom_call.1} parent=5 // pred_fallthru
        _
    $region6: #{tpu_custom_call.1} parent=1 // loop_footer
      %s38 = sadd.s32 1, %s34
    $region7: #{tpu_custom_call.1} parent=1 // loop_footer_branch
      %33 = sbr.rel target = $region3
    $region8: #{tpu_custom_call.1} parent=1 // loop_exit
      _
    %1808 = vsyncpa [#allocation3], 1
    %s1809 = scalar_lea.sflag [#allocation3], 1
    %1810 = vsyncpa %s1809, 1
    %1811 = vsyncpa [#allocation6], 1
    %1812 = vsyncpa [#allocation9], 1
    %1813 = vsyncpa [#allocation12], 1
    %1814 = vsyncpa [#allocation4], 1
    %s1815 = scalar_lea.sflag [#allocation4], 1
    %1816 = vsyncpa %s1815, 1

</llo_original>
